<compile_context>
chip_gen: v7x
topology: tpu7x:2x2x1
jax: 0.10.0
libtpu: 0.0.40
codegen_flags: <defaults>
</compile_context>

<pallas_src>
import functools

import numpy as np
import jax
import jax.numpy as jnp
from jax import lax
from jax.experimental import pallas as pl
from jax.experimental.pallas import tpu as pltpu

VMEM = pltpu.MemorySpace.VMEM


def _round8(v):
    return int(np.ceil(v / 8) * 8)


# ----------------------------------------------------------------------------- kernel

def egat_fused_kernel(x_ref, g_ref, p_ref, o_ref, *,
                      layer_in_ch, n, heads, out_ch, num_inputs, neg_slope, meta):
    """Fused EGAT forward: all used conv layers + out_lin + sigmoid, one launch."""
    hn = heads * n
    hc = heads * out_ch
    W_OFF = meta['W_OFF']
    SEL_OFF = meta['SEL_OFF']
    EBLK_OFF = meta['EBLK_OFF']
    BVEC_OFF = meta['BVEC_OFF']
    LAYER_ROWS = meta['LAYER_ROWS']
    OUT_OFF = meta['OUT_OFF']
    OUTW_ROWS = meta['OUTW_ROWS']

    # graph constants — one packed slab, static (8-aligned) sub-views
    adj_stk = g_ref[0:hn, 0:n]                     # [heads*N, N] 1.0 where (dst,src) edge
    stack = g_ref[hn:2 * hn, 0:n]                  # [heads*N, N] per-head diag selector
    unstack = g_ref[2 * hn:2 * hn + n, 0:hn]       # [N, heads*N]
    blockmask = g_ref[2 * hn + n:3 * hn + n, 0:hc]  # [heads*N, heads*C] block diagonal

    x = x_ref[...]
    for l, in_ch in enumerate(layer_in_ch):
        base = l * LAYER_ROWS
        w = p_ref[base + W_OFF:base + W_OFF + in_ch, 0:hc]             # [in_ch, heads*C]
        sel = p_ref[base + SEL_OFF:base + SEL_OFF + 2 * hn, 0:hc]      # [2*heads*N, heads*C]
        e_blk = p_ref[base + EBLK_OFF:base + EBLK_OFF + hn, 0:n]       # [heads*N, N] (precomputed)
        bvec = p_ref[base + BVEC_OFF:base + BVEC_OFF + 8, 0:hc]        # rows: b_lin, bias
        b_lin = bvec[0:1, :]
        bias = bvec[1:2, :]

        # node linear:  H = x @ W + b_lin                              [N, heads*C]
        H = jnp.dot(x, w, preferred_element_type=jnp.float32) + b_lin

        # all per-node attention scalars (att_i and att_j, every head) in ONE
        # NT matmul against H (contract the feature dim of both operands)
        S = lax.dot_general(sel, H, (((1,), (1,)), ((), ())),
                            preferred_element_type=jnp.float32)        # [2*heads*N, N]
        a_i_col = jnp.sum(S[0:hn, :] * stack, axis=1, keepdims=True)   # [heads*N, 1]
        a_j_blk = S[hn:2 * hn, :]                                      # [heads*N, N]

        # attention logits for all heads / all (dst, src) pairs in one slab
        s = a_i_col + a_j_blk + e_blk
        s = jnp.where(s > 0, s, neg_slope * s)                         # leaky_relu
        s = jnp.where(adj_stk > 0, s, jnp.float32(-1e30))              # mask non-edges

        # masked softmax over src (lane axis), all heads in one pass
        m = jnp.max(s, axis=1, keepdims=True)
        p = jnp.exp(s - m) * adj_stk
        den = jnp.sum(p, axis=1, keepdims=True)
        den = jnp.where(den > 0, den, jnp.float32(1.0))
        r = pl.reciprocal(den, approx=True)
        r = r * (2.0 - den * r)            # one Newton step: f32-accurate, EUP-seeded
        alpha = p * r                                                  # [heads*N, N]

        # aggregate all heads with one matmul, fold head blocks back lane-dense
        agg = jnp.dot(alpha, H, preferred_element_type=jnp.float32)    # [heads*N, heads*C]
        out = jnp.dot(unstack, agg * blockmask,
                      preferred_element_type=jnp.float32) + bias       # [N, heads*C]

        # F.elu (applied by EGAT.forward after every used conv)
        x = jnp.where(out > 0, out, jnp.exp(jnp.minimum(out, 0.0)) - 1.0)

    # final Linear(hidden*heads, 1) + sigmoid on the last num_inputs nodes only
    tail = x[n - num_inputs:, :]
    out_w = p_ref[OUT_OFF:OUT_OFF + hc, 0:hc]              # zero-padded beyond col 0
    ob = p_ref[OUT_OFF + OUTW_ROWS:OUT_OFF + OUTW_ROWS + 8, 0:hc]
    y = jnp.dot(tail, out_w, preferred_element_type=jnp.float32) + ob[0:1, :]
    o_ref[...] = 1.0 / (1.0 + jnp.exp(-y[:, 0:1]))


# ----------------------------------------------------------------------------- wrapper

def egat_forward(x, graph_slab, param_slab, meta, layer_in_ch, num_inputs, *,
                 n, heads, out_ch, neg_slope=0.2):
    kernel = functools.partial(
        egat_fused_kernel, layer_in_ch=tuple(layer_in_ch), n=n, heads=heads,
        out_ch=out_ch, num_inputs=num_inputs, neg_slope=neg_slope, meta=meta)
    y = pl.pallas_call(
        kernel,
        out_shape=jax.ShapeDtypeStruct((num_inputs, 1), jnp.float32),
        in_specs=[pl.BlockSpec(memory_space=VMEM)] * 3,
        out_specs=pl.BlockSpec(memory_space=VMEM),
    )(x, graph_slab, param_slab)
    return y[:, 0]


# ----------------------------------------------------------------------------- params / packing glue

def xavier(key, shape, fan_in, fan_out):
    a = float(np.sqrt(6.0 / (fan_in + fan_out)))
    return jax.random.uniform(key, shape, jnp.float32, -a, a)


def make_conv_params(key, in_ch, out_ch, heads, edge_dim):
    k = jax.random.split(key, 3)
    hc = heads * out_ch
    w = xavier(k[0], (in_ch, hc), in_ch, hc)                       # lin.weight^T
    bound = 1.0 / float(np.sqrt(in_ch))
    b_lin = jax.random.uniform(k[1], (1, hc), jnp.float32, -bound, bound)
    att = xavier(k[2], (heads, 2 * out_ch + edge_dim),
                 heads * (2 * out_ch + edge_dim), 2 * out_ch + edge_dim)
    return dict(w=w, b_lin=b_lin, att=att, bias=jnp.zeros((1, hc), jnp.float32))


def pack_graph_slab(adj, heads, n, out_ch):
    """One lane-padded slab holding all graph-layout constants."""
    hn, hc = heads * n, heads * out_ch
    lanes = max(hn, hc, n)
    G = np.zeros((3 * hn + n, lanes), np.float32)
    eye = np.eye(n, dtype=np.float32)
    G[0:hn, 0:n] = np.tile(np.asarray(adj, np.float32), (heads, 1))       # adj, all heads
    G[hn:2 * hn, 0:n] = np.tile(eye, (heads, 1))                          # diag selector
    G[2 * hn:2 * hn + n, 0:hn] = np.tile(eye, (heads, 1)).T               # unstack
    G[2 * hn + n:3 * hn + n, 0:hc] = np.kron(np.eye(heads, dtype=np.float32),
                                             np.ones((n, out_ch), np.float32))
    return jnp.asarray(G)


def pack_param_slab(convs, out_w, out_b, ea_dense, heads, n, out_ch):
    """One lane-padded slab per call holding every layer's weights (+ out head).

    Per layer:  W | sel (= [sel_i; sel_j] selection matrix) | e_blk (precomputed
    edge-attr logits) | {b_lin, bias}.  All offsets are multiples of 8 sublanes.
    """
    hn, hc = heads * n, heads * out_ch
    w_rows = _round8(max(np.asarray(c['w']).shape[0] for c in convs))
    W_OFF = 0
    SEL_OFF = W_OFF + w_rows
    EBLK_OFF = SEL_OFF + 2 * hn
    BVEC_OFF = EBLK_OFF + hn
    LAYER_ROWS = BVEC_OFF + 8
    OUT_OFF = LAYER_ROWS * len(convs)
    OUTW_ROWS = _round8(hc)
    total = OUT_OFF + OUTW_ROWS + 8
    P = np.zeros((total, hc), np.float32)
    ea = np.asarray(ea_dense, np.float32)                                  # [edge_dim, N, N]

    for l, c in enumerate(convs):
        base = l * LAYER_ROWS
        w = np.asarray(c['w'], np.float32)
        P[base + W_OFF:base + W_OFF + w.shape[0], :] = w
        att = np.asarray(c['att'], np.float32)
        att_i, att_j = att[:, :out_ch], att[:, out_ch:2 * out_ch]
        att_e = att[:, 2 * out_ch:]
        sel = np.zeros((2 * hn, hc), np.float32)
        for h in range(heads):
            sel[h * n:(h + 1) * n, h * out_ch:(h + 1) * out_ch] = att_i[h]
            sel[hn + h * n:hn + (h + 1) * n, h * out_ch:(h + 1) * out_ch] = att_j[h]
        P[base + SEL_OFF:base + SEL_OFF + 2 * hn, :] = sel
        # edge-attribute logits precomputed OUTSIDE the kernel (weights x graph consts)
        e_blk = np.einsum('hd,dij->hij', att_e, ea).reshape(hn, n)
        P[base + EBLK_OFF:base + EBLK_OFF + hn, 0:n] = e_blk
        P[base + BVEC_OFF, :] = np.asarray(c['b_lin'], np.float32)[0]
        P[base + BVEC_OFF + 1, :] = np.asarray(c['bias'], np.float32)[0]

    P[OUT_OFF:OUT_OFF + hc, 0:1] = np.asarray(out_w, np.float32)
    P[OUT_OFF + OUTW_ROWS, :] = float(np.asarray(out_b, np.float32)[0, 0])
    meta = dict(W_OFF=W_OFF, SEL_OFF=SEL_OFF, EBLK_OFF=EBLK_OFF, BVEC_OFF=BVEC_OFF,
                LAYER_ROWS=LAYER_ROWS, OUT_OFF=OUT_OFF, OUTW_ROWS=OUTW_ROWS)
    return jnp.asarray(P), meta


# pure-JAX edge-list reference (segment ops) used to validate the dense kernel math
def egat_ref(x, edge_index, edge_attr, params, num_inputs, *, heads, C, neg_slope=0.2):
    src, dst = edge_index
    n = x.shape[0]
    for layer in params['convs']:
        H = (x @ layer['w'] + layer['b_lin'][0]).reshape(n, heads, C)
        x_i, x_j = H[dst], H[src]
        ea = jnp.broadcast_to(edge_attr[:, None, :],
                              (edge_attr.shape[0], heads, edge_attr.shape[1]))
        a = jnp.sum(jnp.concatenate([x_i, x_j, ea], axis=-1) * layer['att'][None], axis=-1)
        a = jnp.where(a > 0, a, neg_slope * a)
        amax = jax.ops.segment_max(a, dst, num_segments=n)
        ex = jnp.exp(a - amax[dst])
        denom = jax.ops.segment_sum(ex, dst, num_segments=n)
        alpha = ex / (denom[dst] + 1e-16)
        out = jax.ops.segment_sum(x_j * alpha[:, :, None], dst, num_segments=n)
        out = out.reshape(n, heads * C) + layer['bias'][0]
        x = jnp.where(out > 0, out, jnp.exp(out) - 1.0)
    y = x @ params['out_w'] + params['out_b'][0]
    return jax.nn.sigmoid(y[-num_inputs:, 0])


# ----------------------------------------------------------------------------- main

if __name__ == "__main__":
    N, in_ch, hidden, heads, edge_dim = 16, 8, 8, 4, 4
    num_layers, num_inputs = 3, 4

    key = jax.random.PRNGKey(0)
    kx, ke, kp = jax.random.split(key, 3)

    # simple synthetic graph: node i receives edges from (i-1) and (i-2) mod N
    src = np.concatenate([np.arange(N), np.arange(N)])
    dst = np.concatenate([(np.arange(N) + 1) % N, (np.arange(N) + 2) % N])
    E = src.shape[0]

    x = jax.random.normal(kx, (N, in_ch), jnp.float32)
    edge_attr = jax.random.normal(ke, (E, edge_dim), jnp.float32)

    # densify the graph (glue); [dst, src] layout, src on lanes; simple graph assumed
    adj = np.zeros((N, N), np.float32)
    adj[dst, src] = 1.0
    ea_dense = np.zeros((edge_dim, N, N), np.float32)
    ea_dense[:, dst, src] = np.asarray(edge_attr).T

    # EGAT builds `num_layers` convs but forward only uses convs[:-1]
    keys = jax.random.split(kp, num_layers)
    convs = [make_conv_params(keys[0], in_ch, hidden, heads, edge_dim)]
    for i in range(1, num_layers - 1):
        convs.append(make_conv_params(keys[i], hidden * heads, hidden, heads, edge_dim))
    out_w = xavier(keys[-1], (hidden * heads, 1), hidden * heads, 1)
    out_b = jnp.zeros((1, 1), jnp.float32)
    params = dict(convs=convs, out_w=out_w, out_b=out_b)

    graph_slab = pack_graph_slab(adj, heads, N, hidden)
    param_slab, meta = pack_param_slab(convs, out_w, out_b, ea_dense, heads, N, hidden)
    layer_in_ch = [in_ch] + [hidden * heads] * (num_layers - 2)

    out = egat_forward(x, graph_slab, param_slab, meta, layer_in_ch, num_inputs,
                       n=N, heads=heads, out_ch=hidden)
    out = jax.block_until_ready(out)

    ref = egat_ref(x, (jnp.asarray(src), jnp.asarray(dst)), edge_attr, params,
                   num_inputs, heads=heads, C=hidden)
    np.testing.assert_allclose(np.asarray(out), np.asarray(ref), rtol=2e-4, atol=2e-4)
    assert out.shape == (num_inputs,)
    print("KERNEL_OK")
</pallas_src>

<mosaic_0001>
module attributes {stable_mosaic.version = 11 : i64} {
  func.func @egat_fused_kernel(%arg0: memref<16x8xf32, #tpu.memory_space<vmem>>, %arg1: memref<208x64xf32, #tpu.memory_space<vmem>>, %arg2: memref<504x32xf32, #tpu.memory_space<vmem>>, %arg3: memref<4x1xf32, #tpu.memory_space<vmem>>) attributes {dimension_semantics = [], scalar_prefetch = 0 : i64, scratch_operands = 0 : i64, tpu.core_type = #tpu.core_type<tc>} {
    %c0 = arith.constant 0 : index
    %c0_0 = arith.constant 0 : index
    %0 = vector.load %arg1[%c0, %c0_0] : memref<208x64xf32, #tpu.memory_space<vmem>>, vector<64x16xf32>
    %c64 = arith.constant 64 : index
    %c0_1 = arith.constant 0 : index
    %1 = vector.load %arg1[%c64, %c0_1] : memref<208x64xf32, #tpu.memory_space<vmem>>, vector<64x16xf32>
    %c128 = arith.constant 128 : index
    %c0_2 = arith.constant 0 : index
    %2 = vector.load %arg1[%c128, %c0_2] : memref<208x64xf32, #tpu.memory_space<vmem>>, vector<16x64xf32>
    %c144 = arith.constant 144 : index
    %c0_3 = arith.constant 0 : index
    %3 = vector.load %arg1[%c144, %c0_3] : memref<208x64xf32, #tpu.memory_space<vmem>>, vector<64x32xf32>
    %c0_4 = arith.constant 0 : index
    %c0_5 = arith.constant 0 : index
    %4 = vector.load %arg0[%c0_4, %c0_5] : memref<16x8xf32, #tpu.memory_space<vmem>>, vector<16x8xf32>
    %c0_6 = arith.constant 0 : index
    %c0_7 = arith.constant 0 : index
    %5 = vector.load %arg2[%c0_6, %c0_7] : memref<504x32xf32, #tpu.memory_space<vmem>>, vector<8x32xf32>
    %c32 = arith.constant 32 : index
    %c0_8 = arith.constant 0 : index
    %6 = vector.load %arg2[%c32, %c0_8] : memref<504x32xf32, #tpu.memory_space<vmem>>, vector<128x32xf32>
    %c160 = arith.constant 160 : index
    %c0_9 = arith.constant 0 : index
    %7 = vector.load %arg2[%c160, %c0_9] : memref<504x32xf32, #tpu.memory_space<vmem>>, vector<64x16xf32>
    %c224 = arith.constant 224 : index
    %c0_10 = arith.constant 0 : index
    %8 = vector.load %arg2[%c224, %c0_10] : memref<504x32xf32, #tpu.memory_space<vmem>>, vector<8x32xf32>
    %9 = vector.extract_strided_slice %8 {offsets = [0, 0], sizes = [1, 32], strides = [1, 1]} : vector<8x32xf32> to vector<1x32xf32>
    %10 = vector.extract_strided_slice %8 {offsets = [1, 0], sizes = [1, 32], strides = [1, 1]} : vector<8x32xf32> to vector<1x32xf32>
    %cst = arith.constant dense<0.000000e+00> : vector<16x32xf32>
    %11 = tpu.matmul %4, %5, %cst {dimension_numbers = #tpu.dot_dimension_numbers<[1], [0], [0], [1], [0, 0, 1, 1], [], []>} : vector<16x8xf32>, vector<8x32xf32>, vector<16x32xf32> -> vector<16x32xf32>
    %12 = vector.broadcast %9 : vector<1x32xf32> to vector<16x32xf32>
    %13 = arith.addf %11, %12 : vector<16x32xf32>
    %cst_11 = arith.constant dense<0.000000e+00> : vector<128x16xf32>
    %14 = tpu.matmul %6, %13, %cst_11 {dimension_numbers = #tpu.dot_dimension_numbers<[1], [1], [0], [0], [0, 0, 1, 0], [], []>} : vector<128x32xf32>, vector<16x32xf32>, vector<128x16xf32> -> vector<128x16xf32>
    %15 = vector.extract_strided_slice %14 {offsets = [0, 0], sizes = [64, 16], strides = [1, 1]} : vector<128x16xf32> to vector<64x16xf32>
    %16 = arith.mulf %15, %1 : vector<64x16xf32>
    %cst_12 = arith.constant dense<0.000000e+00> : vector<64xf32>
    %17 = vector.multi_reduction <add>, %16, %cst_12 [1] : vector<64x16xf32> to vector<64xf32>
    %18 = vector.shape_cast %17 : vector<64xf32> to vector<64x1xf32>
    %19 = vector.extract_strided_slice %14 {offsets = [64, 0], sizes = [64, 16], strides = [1, 1]} : vector<128x16xf32> to vector<64x16xf32>
    %20 = vector.broadcast %18 : vector<64x1xf32> to vector<64x16xf32>
    %21 = arith.addf %20, %19 : vector<64x16xf32>
    %22 = arith.addf %21, %7 : vector<64x16xf32>
    %cst_13 = arith.constant 0.000000e+00 : f32
    %23 = vector.broadcast %cst_13 : f32 to vector<64x16xf32>
    %24 = arith.cmpf ogt, %22, %23 : vector<64x16xf32>
    %cst_14 = arith.constant 2.000000e-01 : f32
    %25 = vector.broadcast %cst_14 : f32 to vector<64x16xf32>
    %26 = arith.mulf %25, %22 : vector<64x16xf32>
    %27 = arith.select %24, %22, %26 : vector<64x16xi1>, vector<64x16xf32>
    %cst_15 = arith.constant 0.000000e+00 : f32
    %28 = vector.broadcast %cst_15 : f32 to vector<64x16xf32>
    %29 = arith.cmpf ogt, %0, %28 : vector<64x16xf32>
    %cst_16 = arith.constant -1.000000e+30 : f32
    %30 = vector.broadcast %cst_16 : f32 to vector<64x16xf32>
    %31 = arith.select %29, %27, %30 : vector<64x16xi1>, vector<64x16xf32>
    %cst_17 = arith.constant dense<0xFF800000> : vector<64xf32>
    %32 = vector.multi_reduction <maximumf>, %31, %cst_17 [1] : vector<64x16xf32> to vector<64xf32>
    %33 = vector.shape_cast %32 : vector<64xf32> to vector<64x1xf32>
    %34 = vector.broadcast %33 : vector<64x1xf32> to vector<64x16xf32>
    %35 = arith.subf %31, %34 : vector<64x16xf32>
    %36 = math.exp %35 : vector<64x16xf32>
    %37 = arith.mulf %36, %0 : vector<64x16xf32>
    %cst_18 = arith.constant dense<0.000000e+00> : vector<64xf32>
    %38 = vector.multi_reduction <add>, %37, %cst_18 [1] : vector<64x16xf32> to vector<64xf32>
    %39 = vector.shape_cast %38 : vector<64xf32> to vector<64x1xf32>
    %cst_19 = arith.constant 0.000000e+00 : f32
    %40 = vector.broadcast %cst_19 : f32 to vector<64x1xf32>
    %41 = arith.cmpf ogt, %39, %40 : vector<64x1xf32>
    %cst_20 = arith.constant 1.000000e+00 : f32
    %42 = vector.broadcast %cst_20 : f32 to vector<64x1xf32>
    %43 = arith.select %41, %39, %42 : vector<64x1xi1>, vector<64x1xf32>
    %44 = tpu.reciprocal %43 {approx = true} : vector<64x1xf32> -> vector<64x1xf32>
    %45 = arith.mulf %43, %44 : vector<64x1xf32>
    %cst_21 = arith.constant 2.000000e+00 : f32
    %46 = vector.broadcast %cst_21 : f32 to vector<64x1xf32>
    %47 = arith.subf %46, %45 : vector<64x1xf32>
    %48 = arith.mulf %44, %47 : vector<64x1xf32>
    %49 = vector.broadcast %48 : vector<64x1xf32> to vector<64x16xf32>
    %50 = arith.mulf %37, %49 : vector<64x16xf32>
    %cst_22 = arith.constant dense<0.000000e+00> : vector<64x32xf32>
    %51 = tpu.matmul %50, %13, %cst_22 {dimension_numbers = #tpu.dot_dimension_numbers<[1], [0], [0], [1], [0, 0, 1, 1], [], []>} : vector<64x16xf32>, vector<16x32xf32>, vector<64x32xf32> -> vector<64x32xf32>
    %52 = arith.mulf %51, %3 : vector<64x32xf32>
    %cst_23 = arith.constant dense<0.000000e+00> : vector<16x32xf32>
    %53 = tpu.matmul %2, %52, %cst_23 {dimension_numbers = #tpu.dot_dimension_numbers<[1], [0], [0], [1], [0, 0, 1, 1], [], []>} : vector<16x64xf32>, vector<64x32xf32>, vector<16x32xf32> -> vector<16x32xf32>
    %54 = vector.broadcast %10 : vector<1x32xf32> to vector<16x32xf32>
    %55 = arith.addf %53, %54 : vector<16x32xf32>
    %cst_24 = arith.constant 0.000000e+00 : f32
    %56 = vector.broadcast %cst_24 : f32 to vector<16x32xf32>
    %57 = arith.cmpf ogt, %55, %56 : vector<16x32xf32>
    %cst_25 = arith.constant 0.000000e+00 : f32
    %58 = vector.broadcast %cst_25 : f32 to vector<16x32xf32>
    %59 = arith.minimumf %55, %58 : vector<16x32xf32>
    %60 = math.exp %59 : vector<16x32xf32>
    %cst_26 = arith.constant 1.000000e+00 : f32
    %61 = vector.broadcast %cst_26 : f32 to vector<16x32xf32>
    %62 = arith.subf %60, %61 : vector<16x32xf32>
    %63 = arith.select %57, %55, %62 : vector<16x32xi1>, vector<16x32xf32>
    %c232 = arith.constant 232 : index
    %c0_27 = arith.constant 0 : index
    %64 = vector.load %arg2[%c232, %c0_27] : memref<504x32xf32, #tpu.memory_space<vmem>>, vector<32x32xf32>
    %c264 = arith.constant 264 : index
    %c0_28 = arith.constant 0 : index
    %65 = vector.load %arg2[%c264, %c0_28] : memref<504x32xf32, #tpu.memory_space<vmem>>, vector<128x32xf32>
    %c392 = arith.constant 392 : index
    %c0_29 = arith.constant 0 : index
    %66 = vector.load %arg2[%c392, %c0_29] : memref<504x32xf32, #tpu.memory_space<vmem>>, vector<64x16xf32>
    %c456 = arith.constant 456 : index
    %c0_30 = arith.constant 0 : index
    %67 = vector.load %arg2[%c456, %c0_30] : memref<504x32xf32, #tpu.memory_space<vmem>>, vector<8x32xf32>
    %68 = vector.extract_strided_slice %67 {offsets = [0, 0], sizes = [1, 32], strides = [1, 1]} : vector<8x32xf32> to vector<1x32xf32>
    %69 = vector.extract_strided_slice %67 {offsets = [1, 0], sizes = [1, 32], strides = [1, 1]} : vector<8x32xf32> to vector<1x32xf32>
    %cst_31 = arith.constant dense<0.000000e+00> : vector<16x32xf32>
    %70 = tpu.matmul %63, %64, %cst_31 {dimension_numbers = #tpu.dot_dimension_numbers<[1], [0], [0], [1], [0, 0, 1, 1], [], []>} : vector<16x32xf32>, vector<32x32xf32>, vector<16x32xf32> -> vector<16x32xf32>
    %71 = vector.broadcast %68 : vector<1x32xf32> to vector<16x32xf32>
    %72 = arith.addf %70, %71 : vector<16x32xf32>
    %cst_32 = arith.constant dense<0.000000e+00> : vector<128x16xf32>
    %73 = tpu.matmul %65, %72, %cst_32 {dimension_numbers = #tpu.dot_dimension_numbers<[1], [1], [0], [0], [0, 0, 1, 0], [], []>} : vector<128x32xf32>, vector<16x32xf32>, vector<128x16xf32> -> vector<128x16xf32>
    %74 = vector.extract_strided_slice %73 {offsets = [0, 0], sizes = [64, 16], strides = [1, 1]} : vector<128x16xf32> to vector<64x16xf32>
    %75 = arith.mulf %74, %1 : vector<64x16xf32>
    %cst_33 = arith.constant dense<0.000000e+00> : vector<64xf32>
    %76 = vector.multi_reduction <add>, %75, %cst_33 [1] : vector<64x16xf32> to vector<64xf32>
    %77 = vector.shape_cast %76 : vector<64xf32> to vector<64x1xf32>
    %78 = vector.extract_strided_slice %73 {offsets = [64, 0], sizes = [64, 16], strides = [1, 1]} : vector<128x16xf32> to vector<64x16xf32>
    %79 = vector.broadcast %77 : vector<64x1xf32> to vector<64x16xf32>
    %80 = arith.addf %79, %78 : vector<64x16xf32>
    %81 = arith.addf %80, %66 : vector<64x16xf32>
    %cst_34 = arith.constant 0.000000e+00 : f32
    %82 = vector.broadcast %cst_34 : f32 to vector<64x16xf32>
    %83 = arith.cmpf ogt, %81, %82 : vector<64x16xf32>
    %cst_35 = arith.constant 2.000000e-01 : f32
    %84 = vector.broadcast %cst_35 : f32 to vector<64x16xf32>
    %85 = arith.mulf %84, %81 : vector<64x16xf32>
    %86 = arith.select %83, %81, %85 : vector<64x16xi1>, vector<64x16xf32>
    %cst_36 = arith.constant 0.000000e+00 : f32
    %87 = vector.broadcast %cst_36 : f32 to vector<64x16xf32>
    %88 = arith.cmpf ogt, %0, %87 : vector<64x16xf32>
    %cst_37 = arith.constant -1.000000e+30 : f32
    %89 = vector.broadcast %cst_37 : f32 to vector<64x16xf32>
    %90 = arith.select %88, %86, %89 : vector<64x16xi1>, vector<64x16xf32>
    %cst_38 = arith.constant dense<0xFF800000> : vector<64xf32>
    %91 = vector.multi_reduction <maximumf>, %90, %cst_38 [1] : vector<64x16xf32> to vector<64xf32>
    %92 = vector.shape_cast %91 : vector<64xf32> to vector<64x1xf32>
    %93 = vector.broadcast %92 : vector<64x1xf32> to vector<64x16xf32>
    %94 = arith.subf %90, %93 : vector<64x16xf32>
    %95 = math.exp %94 : vector<64x16xf32>
    %96 = arith.mulf %95, %0 : vector<64x16xf32>
    %cst_39 = arith.constant dense<0.000000e+00> : vector<64xf32>
    %97 = vector.multi_reduction <add>, %96, %cst_39 [1] : vector<64x16xf32> to vector<64xf32>
    %98 = vector.shape_cast %97 : vector<64xf32> to vector<64x1xf32>
    %cst_40 = arith.constant 0.000000e+00 : f32
    %99 = vector.broadcast %cst_40 : f32 to vector<64x1xf32>
    %100 = arith.cmpf ogt, %98, %99 : vector<64x1xf32>
    %cst_41 = arith.constant 1.000000e+00 : f32
    %101 = vector.broadcast %cst_41 : f32 to vector<64x1xf32>
    %102 = arith.select %100, %98, %101 : vector<64x1xi1>, vector<64x1xf32>
    %103 = tpu.reciprocal %102 {approx = true} : vector<64x1xf32> -> vector<64x1xf32>
    %104 = arith.mulf %102, %103 : vector<64x1xf32>
    %cst_42 = arith.constant 2.000000e+00 : f32
    %105 = vector.broadcast %cst_42 : f32 to vector<64x1xf32>
    %106 = arith.subf %105, %104 : vector<64x1xf32>
    %107 = arith.mulf %103, %106 : vector<64x1xf32>
    %108 = vector.broadcast %107 : vector<64x1xf32> to vector<64x16xf32>
    %109 = arith.mulf %96, %108 : vector<64x16xf32>
    %cst_43 = arith.constant dense<0.000000e+00> : vector<64x32xf32>
    %110 = tpu.matmul %109, %72, %cst_43 {dimension_numbers = #tpu.dot_dimension_numbers<[1], [0], [0], [1], [0, 0, 1, 1], [], []>} : vector<64x16xf32>, vector<16x32xf32>, vector<64x32xf32> -> vector<64x32xf32>
    %111 = arith.mulf %110, %3 : vector<64x32xf32>
    %cst_44 = arith.constant dense<0.000000e+00> : vector<16x32xf32>
    %112 = tpu.matmul %2, %111, %cst_44 {dimension_numbers = #tpu.dot_dimension_numbers<[1], [0], [0], [1], [0, 0, 1, 1], [], []>} : vector<16x64xf32>, vector<64x32xf32>, vector<16x32xf32> -> vector<16x32xf32>
    %113 = vector.broadcast %69 : vector<1x32xf32> to vector<16x32xf32>
    %114 = arith.addf %112, %113 : vector<16x32xf32>
    %cst_45 = arith.constant 0.000000e+00 : f32
    %115 = vector.broadcast %cst_45 : f32 to vector<16x32xf32>
    %116 = arith.cmpf ogt, %114, %115 : vector<16x32xf32>
    %cst_46 = arith.constant 0.000000e+00 : f32
    %117 = vector.broadcast %cst_46 : f32 to vector<16x32xf32>
    %118 = arith.minimumf %114, %117 : vector<16x32xf32>
    %119 = math.exp %118 : vector<16x32xf32>
    %cst_47 = arith.constant 1.000000e+00 : f32
    %120 = vector.broadcast %cst_47 : f32 to vector<16x32xf32>
    %121 = arith.subf %119, %120 : vector<16x32xf32>
    %122 = arith.select %116, %114, %121 : vector<16x32xi1>, vector<16x32xf32>
    %123 = vector.extract_strided_slice %122 {offsets = [12, 0], sizes = [4, 32], strides = [1, 1]} : vector<16x32xf32> to vector<4x32xf32>
    %c464 = arith.constant 464 : index
    %c0_48 = arith.constant 0 : index
    %124 = vector.load %arg2[%c464, %c0_48] : memref<504x32xf32, #tpu.memory_space<vmem>>, vector<32x32xf32>
    %c496 = arith.constant 496 : index
    %c0_49 = arith.constant 0 : index
    %125 = vector.load %arg2[%c496, %c0_49] : memref<504x32xf32, #tpu.memory_space<vmem>>, vector<8x32xf32>
    %cst_50 = arith.constant dense<0.000000e+00> : vector<4x32xf32>
    %126 = tpu.matmul %123, %124, %cst_50 {dimension_numbers = #tpu.dot_dimension_numbers<[1], [0], [0], [1], [0, 0, 1, 1], [], []>} : vector<4x32xf32>, vector<32x32xf32>, vector<4x32xf32> -> vector<4x32xf32>
    %127 = vector.extract_strided_slice %125 {offsets = [0, 0], sizes = [1, 32], strides = [1, 1]} : vector<8x32xf32> to vector<1x32xf32>
    %128 = vector.broadcast %127 : vector<1x32xf32> to vector<4x32xf32>
    %129 = arith.addf %126, %128 : vector<4x32xf32>
    %130 = vector.extract_strided_slice %129 {offsets = [0, 0], sizes = [4, 1], strides = [1, 1]} : vector<4x32xf32> to vector<4x1xf32>
    %cst_51 = arith.constant 0.000000e+00 : f32
    %131 = vector.broadcast %cst_51 : f32 to vector<4x1xf32>
    %132 = arith.subf %131, %130 : vector<4x1xf32>
    %133 = math.exp %132 : vector<4x1xf32>
    %cst_52 = arith.constant 1.000000e+00 : f32
    %134 = vector.broadcast %cst_52 : f32 to vector<4x1xf32>
    %135 = arith.addf %134, %133 : vector<4x1xf32>
    %cst_53 = arith.constant 1.000000e+00 : f32
    %136 = vector.broadcast %cst_53 : f32 to vector<4x1xf32>
    %137 = arith.divf %136, %135 : vector<4x1xf32>
    %c0_54 = arith.constant 0 : index
    %c0_55 = arith.constant 0 : index
    %138 = vector.load %arg3[%c0_54, %c0_55] : memref<4x1xf32, #tpu.memory_space<vmem>>, vector<4x1xf32>
    tpu.vector_store %arg3[%c0_54, %c0_55], %137 {strides = array<i32>} : memref<4x1xf32, #tpu.memory_space<vmem>>, vector<4x1xf32>,
    return
  }
}

</mosaic_0001>

<llo_original>
// kernel: tpu_custom_call.1
$region0: #{tpu_custom_call.1}
  #allocation0 [shape = 'u32[]', space=smem, size = 0x4, offset = 0x4, fixed_abs, tag = 'smem constant byte address 0x4 - core index']
  #allocation1 [shape = 'u32[144,128]{1,0:T(1,128)}', space=vmem, size = 0x12000, scoped, tag = 'internal scratch']
  %s0 = inlined_call_operand.vmem [shape: f32[16,8], index: 0, kind: input, shape index: {}]
  %s1 = inlined_call_operand.vmem [shape: f32[208,64], index: 1, kind: input, shape index: {}]
  %s2 = inlined_call_operand.vmem [shape: f32[504,32], index: 2, kind: input, shape index: {}]
  %s3 = inlined_call_operand.vmem [shape: f32[4,1], index: 3, kind: output, shape index: {}]
  %s4 = sld [smem:[#allocation0]]
  $region22: #{tpu_custom_call.1} parent=0
    _
  %s6 = ssub.s32 1, %s4
  %s7 = scalar_select 0, %s6, %s4
  // Predicated region
  $region2: #{tpu_custom_call.1} parent=0 // pred_check
    _
  $region3: #{tpu_custom_call.1} parent=0 // pred_check_branch
    %9 = sbr.rel (0) target = $region5
  $region4: #{tpu_custom_call.1} parent=0 // pred_region
    _
  $region5: #{tpu_custom_call.1} parent=0 // pred_fallthru
    _
  // Predicated region
  $region6: #{tpu_custom_call.1} parent=0 // pred_check
    _
  $region7: #{tpu_custom_call.1} parent=0 // pred_check_branch
    %11 = sbr.rel (0) target = $region9
  $region8: #{tpu_custom_call.1} parent=0 // pred_region
    _
  $region9: #{tpu_custom_call.1} parent=0 // pred_fallthru
    _
  // Predicated region
  $region10: #{tpu_custom_call.1} parent=0 // pred_check
    _
  $region11: #{tpu_custom_call.1} parent=0 // pred_check_branch
    %13 = sbr.rel (0) target = $region13
  $region12: #{tpu_custom_call.1} parent=0 // pred_region
    _
  $region13: #{tpu_custom_call.1} parent=0 // pred_fallthru
    _
  %v14 = vld [vmem:[%s1] sm:$0xff]
  %v15 = vld [vmem:[%s1 + $0x8] sm:$0xff]
  %v16 = vld [vmem:[%s1 + $0x10] sm:$0xff]
  %v17 = vld [vmem:[%s1 + $0x18] sm:$0xff]
  %v18 = vld [vmem:[%s1 + $0x20] sm:$0xff]
  %v19 = vld [vmem:[%s1 + $0x28] sm:$0xff]
  %v20 = vld [vmem:[%s1 + $0x30] sm:$0xff]
  %v21 = vld [vmem:[%s1 + $0x38] sm:$0xff]
  %v22 = vld [vmem:[%s1 + $0x40] sm:$0xff]
  %v23 = vld [vmem:[%s1 + $0x48] sm:$0xff]
  %v24 = vld [vmem:[%s1 + $0x50] sm:$0xff]
  %v25 = vld [vmem:[%s1 + $0x58] sm:$0xff]
  %v26 = vld [vmem:[%s1 + $0x60] sm:$0xff]
  %v27 = vld [vmem:[%s1 + $0x68] sm:$0xff]
  %v28 = vld [vmem:[%s1 + $0x70] sm:$0xff]
  %v29 = vld [vmem:[%s1 + $0x78] sm:$0xff]
  %v30 = vld [vmem:[%s1 + $0x80] sm:$0xff]
  %v31 = vld [vmem:[%s1 + $0x88] sm:$0xff]
  %v32 = vld [vmem:[%s1 + $0x90] sm:$0xff]
  %v33 = vld [vmem:[%s1 + $0x98] sm:$0xff]
  %v34 = vld [vmem:[%s1 + $0xa0] sm:$0xff]
  %v35 = vld [vmem:[%s1 + $0xa8] sm:$0xff]
  %v36 = vld [vmem:[%s1 + $0xb0] sm:$0xff]
  %v37 = vld [vmem:[%s1 + $0xb8] sm:$0xff]
  %v38 = vld [vmem:[%s1 + $0xc0] sm:$0xff]
  %v39 = vld [vmem:[%s1 + $0xc8] sm:$0xff]
  %v40 = vld [vmem:[%s0] sm:$0xff]
  %v41 = vld [vmem:[%s0 + $0x8] sm:$0xff]
  %v42 = vld [vmem:[%s2] sm:$0xff]
  %v43 = vld [vmem:[%s2 + $0x20] sm:$0xff]
  %v44 = vld [vmem:[%s2 + $0x28] sm:$0xff]
  %v45 = vld [vmem:[%s2 + $0x30] sm:$0xff]
  %v46 = vld [vmem:[%s2 + $0x38] sm:$0xff]
  %v47 = vld [vmem:[%s2 + $0x40] sm:$0xff]
  %v48 = vld [vmem:[%s2 + $0x48] sm:$0xff]
  %v49 = vld [vmem:[%s2 + $0x50] sm:$0xff]
  %v50 = vld [vmem:[%s2 + $0x58] sm:$0xff]
  %v51 = vld [vmem:[%s2 + $0x60] sm:$0xff]
  %v52 = vld [vmem:[%s2 + $0x68] sm:$0xff]
  %v53 = vld [vmem:[%s2 + $0x70] sm:$0xff]
  %v54 = vld [vmem:[%s2 + $0x78] sm:$0xff]
  %v55 = vld [vmem:[%s2 + $0x80] sm:$0xff]
  %v56 = vld [vmem:[%s2 + $0x88] sm:$0xff]
  %v57 = vld [vmem:[%s2 + $0x90] sm:$0xff]
  %v58 = vld [vmem:[%s2 + $0x98] sm:$0xff]
  %v59 = vld [vmem:[%s2 + $0xa0] sm:$0xff]
  %v60 = vld [vmem:[%s2 + $0xa8] sm:$0xff]
  %v61 = vld [vmem:[%s2 + $0xb0] sm:$0xff]
  %v62 = vld [vmem:[%s2 + $0xb8] sm:$0xff]
  %v63 = vld [vmem:[%s2 + $0xc0] sm:$0xff]
  %v64 = vld [vmem:[%s2 + $0xc8] sm:$0xff]
  %v65 = vld [vmem:[%s2 + $0xd0] sm:$0xff]
  %v66 = vld [vmem:[%s2 + $0xd8] sm:$0xff]
  %v67 = vld [vmem:[%s2 + $0xe0] sm:$0xff]
  %v68 = vlaneseq
  %v69 = vshrl.u32 %v68, 7
  %v70 = vsub.s32 0, %v69
  %v71 = vrot.slane %v67, %v70
  %vm72 = vcmask 64512
  %v74 = vsel %vm72, %v40, 0
  %v77 = vsel %vm72, %v41, 0
  %79 = vmatprep.subr.mxu0 0.0
  %80 = vmatpush1.msra.mxu0 %v42
  %81 = vmatprep.subr.mxu0 0.0
  %82 = vmatpush1.msra.mxu0 0.0
  %83 = vmatprep.subr.mxu0 0.0
  %84 = vmatpush1.msra.mxu0 0.0
  %85 = vmatprep.subr.mxu0 0.0
  %86 = vmatpush1.msra.mxu0 0.0
  %87 = vmatprep.subr.mxu0 0.0
  %88 = vmatpush1.msra.mxu0 0.0
  %89 = vmatprep.subr.mxu0 0.0
  %90 = vmatpush1.msra.mxu0 0.0
  %91 = vmatprep.subr.mxu0 0.0
  %92 = vmatpush1.msra.mxu0 0.0
  %93 = vmatprep.subr.mxu0 0.0
  %94 = vmatpush1.msra.mxu0 0.0
  %95 = vmatprep.subr.mxu0 0.0
  %96 = vmatpush1.msra.mxu0 0.0
  %97 = vmatprep.subr.mxu0 0.0
  %98 = vmatpush1.msra.mxu0 0.0
  %99 = vmatprep.subr.mxu0 0.0
  %100 = vmatpush1.msra.mxu0 0.0
  %101 = vmatprep.subr.mxu0 0.0
  %102 = vmatpush1.msra.mxu0 0.0
  %103 = vmatprep.subr.mxu0 0.0
  %104 = vmatpush1.msra.mxu0 0.0
  %105 = vmatprep.subr.mxu0 0.0
  %106 = vmatpush1.msra.mxu0 0.0
  %107 = vmatprep.subr.mxu0 0.0
  %108 = vmatpush1.msra.mxu0 0.0
  %109 = vmatprep.subr.mxu0 0.0
  %110 = vmatpush1.msra.mxu0 0.0
  %111 = vmatprep.subr.mxu0 0.0
  %112 = vmatpush1.msra.mxu0 0.0
  %113 = vmatprep.subr.mxu0 0.0
  %114 = vmatpush1.msra.mxu0 0.0
  %115 = vmatprep.subr.mxu0 0.0
  %116 = vmatpush1.msra.mxu0 0.0
  %117 = vmatprep.subr.mxu0 0.0
  %118 = vmatpush1.msra.mxu0 0.0
  %119 = vmatprep.subr.mxu0 0.0
  %120 = vmatpush1.msra.mxu0 0.0
  %121 = vmatprep.subr.mxu0 0.0
  %122 = vmatpush1.msra.mxu0 0.0
  %123 = vmatprep.subr.mxu0 0.0
  %124 = vmatpush1.msra.mxu0 0.0
  %125 = vmatprep.subr.mxu0 0.0
  %126 = vmatpush1.msra.mxu0 0.0
  %127 = vmatprep.subr.mxu0 0.0
  %128 = vmatpush1.msra.mxu0 0.0
  %129 = vmatprep.subr.mxu0 0.0
  %130 = vmatpush1.msra.mxu0 0.0
  %131 = vmatprep.subr.mxu0 0.0
  %132 = vmatpush1.msra.mxu0 0.0
  %133 = vmatprep.subr.mxu0 0.0
  %134 = vmatpush1.msra.mxu0 0.0
  %135 = vmatprep.subr.mxu0 0.0
  %136 = vmatpush1.msra.mxu0 0.0
  %137 = vmatprep.subr.mxu0 0.0
  %138 = vmatpush1.msra.mxu0 0.0
  %139 = vmatprep.subr.mxu0 0.0
  %140 = vmatpush1.msra.mxu0 0.0
  %141 = vmatprep.subr.mxu0 0.0
  %142 = vmatpush1.msra.mxu0 0.0
  %143 = vmatprep.mubr.f32.mxu0 0.0
  %144 = vmatmul.mubr.f32.gmra.mrb[0].mxu0 %v74
  %v145 = vpop.f32.mrb[0].mxu0
  %v146 = vadd.f32 %v71, %v145
  %v147 = vpop.f32.mrb[0].mxu0
  %148 = vmatprep.mubr.f32.mxu0 0.0
  %149 = vmatmul.mubr.f32.gmra.mrb[0].mxu0 %v77
  %v150 = vpop.f32.mrb[0].mxu0
  %v151 = vadd.f32 %v71, %v150
  %v152 = vpop.f32.mrb[0].mxu0
  %153 = vdwg.mxu0
  %vm154 = vcmask 261120
  %v156 = vsel %vm154, %v43, 0
  %v159 = vsel %vm154, %v44, 0
  %v162 = vsel %vm154, %v45, 0
  %v165 = vsel %vm154, %v46, 0
  %v168 = vsel %vm154, %v47, 0
  %v171 = vsel %vm154, %v48, 0
  %v174 = vsel %vm154, %v49, 0
  %v177 = vsel %vm154, %v50, 0
  %v180 = vsel %vm154, %v51, 0
  %v183 = vsel %vm154, %v52, 0
  %v186 = vsel %vm154, %v53, 0
  %v189 = vsel %vm154, %v54, 0
  %v192 = vsel %vm154, %v55, 0
  %v195 = vsel %vm154, %v56, 0
  %v198 = vsel %vm154, %v57, 0
  %v201 = vsel %vm154, %v58, 0
  %v204 = vsel %vm154, %v146, 0
  %v207 = vsel %vm154, %v151, 0
  %209 = vmatprep.subr.mxu0 0.0
  %210 = vmatpush1.xpose.msra.mxu0 %v204
  %211 = vmatprep.subr.mxu0 0.0
  %212 = vmatpush1.xpose.msra.mxu0 %v207
  %213 = vmatprep.subr.mxu0 0.0
  %214 = vmatpush1.xpose.msra.mxu0 0.0
  %215 = vmatprep.subr.mxu0 0.0
  %216 = vmatpush1.xpose.msra.mxu0 0.0
  %217 = vmatprep.subr.mxu0 0.0
  %218 = vmatpush1.xpose.msra.mxu0 0.0
  %219 = vmatprep.subr.mxu0 0.0
  %220 = vmatpush1.xpose.msra.mxu0 0.0
  %221 = vmatprep.subr.mxu0 0.0
  %222 = vmatpush1.xpose.msra.mxu0 0.0
  %223 = vmatprep.subr.mxu0 0.0
  %224 = vmatpush1.xpose.msra.mxu0 0.0
  %225 = vmatprep.subr.mxu0 0.0
  %226 = vmatpush1.xpose.msra.mxu0 0.0
  %227 = vmatprep.subr.mxu0 0.0
  %228 = vmatpush1.xpose.msra.mxu0 0.0
  %229 = vmatprep.subr.mxu0 0.0
  %230 = vmatpush1.xpose.msra.mxu0 0.0
  %231 = vmatprep.subr.mxu0 0.0
  %232 = vmatpush1.xpose.msra.mxu0 0.0
  %233 = vmatprep.subr.mxu0 0.0
  %234 = vmatpush1.xpose.msra.mxu0 0.0
  %235 = vmatprep.subr.mxu0 0.0
  %236 = vmatpush1.xpose.msra.mxu0 0.0
  %237 = vmatprep.subr.mxu0 0.0
  %238 = vmatpush1.xpose.msra.mxu0 0.0
  %239 = vmatprep.subr.mxu0 0.0
  %240 = vmatpush1.xpose.msra.mxu0 0.0
  %241 = vmatprep.subr.mxu0 0.0
  %242 = vmatpush1.xpose.msra.mxu0 0.0
  %243 = vmatprep.subr.mxu0 0.0
  %244 = vmatpush1.xpose.msra.mxu0 0.0
  %245 = vmatprep.subr.mxu0 0.0
  %246 = vmatpush1.xpose.msra.mxu0 0.0
  %247 = vmatprep.subr.mxu0 0.0
  %248 = vmatpush1.xpose.msra.mxu0 0.0
  %249 = vmatprep.subr.mxu0 0.0
  %250 = vmatpush1.xpose.msra.mxu0 0.0
  %251 = vmatprep.subr.mxu0 0.0
  %252 = vmatpush1.xpose.msra.mxu0 0.0
  %253 = vmatprep.subr.mxu0 0.0
  %254 = vmatpush1.xpose.msra.mxu0 0.0
  %255 = vmatprep.subr.mxu0 0.0
  %256 = vmatpush1.xpose.msra.mxu0 0.0
  %257 = vmatprep.subr.mxu0 0.0
  %258 = vmatpush1.xpose.msra.mxu0 0.0
  %259 = vmatprep.subr.mxu0 0.0
  %260 = vmatpush1.xpose.msra.mxu0 0.0
  %261 = vmatprep.subr.mxu0 0.0
  %262 = vmatpush1.xpose.msra.mxu0 0.0
  %263 = vmatprep.subr.mxu0 0.0
  %264 = vmatpush1.xpose.msra.mxu0 0.0
  %265 = vmatprep.subr.mxu0 0.0
  %266 = vmatpush1.xpose.msra.mxu0 0.0
  %267 = vmatprep.subr.mxu0 0.0
  %268 = vmatpush1.xpose.msra.mxu0 0.0
  %269 = vmatprep.subr.mxu0 0.0
  %270 = vmatpush1.xpose.msra.mxu0 0.0
  %271 = vmatprep.subr.mxu0 0.0
  %272 = vmatpush1.xpose.msra.mxu0 0.0
  %273 = vmatprep.mubr.f32.mxu0 0.0
  %274 = vmatmul.mubr.f32.gmra.mrb[0].mxu0 %v156
  %v275 = vpop.f32.mrb[0].mxu0
  %v276 = vadd.f32 0.0, %v275
  %v277 = vpop.f32.mrb[0].mxu0
  %278 = vmatprep.mubr.f32.mxu0 0.0
  %279 = vmatmul.mubr.f32.gmra.mrb[0].mxu0 %v159
  %v280 = vpop.f32.mrb[0].mxu0
  %v281 = vadd.f32 0.0, %v280
  %v282 = vpop.f32.mrb[0].mxu0
  %283 = vmatprep.mubr.f32.mxu0 0.0
  %284 = vmatmul.mubr.f32.gmra.mrb[0].mxu0 %v162
  %v285 = vpop.f32.mrb[0].mxu0
  %v286 = vadd.f32 0.0, %v285
  %v287 = vpop.f32.mrb[0].mxu0
  %288 = vmatprep.mubr.f32.mxu0 0.0
  %289 = vmatmul.mubr.f32.gmra.mrb[0].mxu0 %v165
  %v290 = vpop.f32.mrb[0].mxu0
  %v291 = vadd.f32 0.0, %v290
  %v292 = vpop.f32.mrb[0].mxu0
  %293 = vmatprep.mubr.f32.mxu0 0.0
  %294 = vmatmul.mubr.f32.gmra.mrb[0].mxu0 %v168
  %v295 = vpop.f32.mrb[0].mxu0
  %v296 = vadd.f32 0.0, %v295
  %v297 = vpop.f32.mrb[0].mxu0
  %298 = vmatprep.mubr.f32.mxu0 0.0
  %299 = vmatmul.mubr.f32.gmra.mrb[0].mxu0 %v171
  %v300 = vpop.f32.mrb[0].mxu0
  %v301 = vadd.f32 0.0, %v300
  %v302 = vpop.f32.mrb[0].mxu0
  %303 = vmatprep.mubr.f32.mxu0 0.0
  %304 = vmatmul.mubr.f32.gmra.mrb[0].mxu0 %v174
  %v305 = vpop.f32.mrb[0].mxu0
  %v306 = vadd.f32 0.0, %v305
  %v307 = vpop.f32.mrb[0].mxu0
  %308 = vmatprep.mubr.f32.mxu0 0.0
  %309 = vmatmul.mubr.f32.gmra.mrb[0].mxu0 %v177
  %v310 = vpop.f32.mrb[0].mxu0
  %v311 = vadd.f32 0.0, %v310
  %v312 = vpop.f32.mrb[0].mxu0
  %313 = vmatprep.mubr.f32.mxu0 0.0
  %314 = vmatmul.mubr.f32.gmra.mrb[0].mxu0 %v180
  %v315 = vpop.f32.mrb[0].mxu0
  %v316 = vadd.f32 0.0, %v315
  %v317 = vpop.f32.mrb[0].mxu0
  %318 = vmatprep.mubr.f32.mxu0 0.0
  %319 = vmatmul.mubr.f32.gmra.mrb[0].mxu0 %v183
  %v320 = vpop.f32.mrb[0].mxu0
  %v321 = vadd.f32 0.0, %v320
  %v322 = vpop.f32.mrb[0].mxu0
  %323 = vmatprep.mubr.f32.mxu0 0.0
  %324 = vmatmul.mubr.f32.gmra.mrb[0].mxu0 %v186
  %v325 = vpop.f32.mrb[0].mxu0
  %v326 = vadd.f32 0.0, %v325
  %v327 = vpop.f32.mrb[0].mxu0
  %328 = vmatprep.mubr.f32.mxu0 0.0
  %329 = vmatmul.mubr.f32.gmra.mrb[0].mxu0 %v189
  %v330 = vpop.f32.mrb[0].mxu0
  %v331 = vadd.f32 0.0, %v330
  %v332 = vpop.f32.mrb[0].mxu0
  %333 = vmatprep.mubr.f32.mxu0 0.0
  %334 = vmatmul.mubr.f32.gmra.mrb[0].mxu0 %v192
  %v335 = vpop.f32.mrb[0].mxu0
  %v336 = vadd.f32 0.0, %v335
  %v337 = vpop.f32.mrb[0].mxu0
  %338 = vmatprep.mubr.f32.mxu0 0.0
  %339 = vmatmul.mubr.f32.gmra.mrb[0].mxu0 %v195
  %v340 = vpop.f32.mrb[0].mxu0
  %v341 = vadd.f32 0.0, %v340
  %v342 = vpop.f32.mrb[0].mxu0
  %343 = vmatprep.mubr.f32.mxu0 0.0
  %344 = vmatmul.mubr.f32.gmra.mrb[0].mxu0 %v198
  %v345 = vpop.f32.mrb[0].mxu0
  %v346 = vadd.f32 0.0, %v345
  %v347 = vpop.f32.mrb[0].mxu0
  %348 = vmatprep.mubr.f32.mxu0 0.0
  %349 = vmatmul.mubr.f32.gmra.mrb[0].mxu0 %v201
  %v350 = vpop.f32.mrb[0].mxu0
  %v351 = vadd.f32 0.0, %v350
  %v352 = vpop.f32.mrb[0].mxu0
  %353 = vdwg.mxu0
  %v354 = vmul.f32 %v276, %v22
  %v355 = vmul.f32 %v281, %v23
  %v356 = vmul.f32 %v286, %v24
  %v357 = vmul.f32 %v291, %v25
  %v358 = vmul.f32 %v296, %v26
  %v359 = vmul.f32 %v301, %v27
  %v360 = vmul.f32 %v306, %v28
  %v361 = vmul.f32 %v311, %v29
  %vm362 = vcmask 130048
  %v363 = vsel %vm362, %v354, 0.0
  %364 = vadd.xlane.f32.xlu0 %v363
  %v365 = vpop.xlane.xlu0 %364
  %v366 = vsel %vm362, %v355, 0.0
  %367 = vadd.xlane.f32.xlu0 %v366
  %v368 = vpop.xlane.xlu0 %367
  %v369 = vsel %vm362, %v356, 0.0
  %370 = vadd.xlane.f32.xlu0 %v369
  %v371 = vpop.xlane.xlu0 %370
  %v372 = vsel %vm362, %v357, 0.0
  %373 = vadd.xlane.f32.xlu0 %v372
  %v374 = vpop.xlane.xlu0 %373
  %v375 = vsel %vm362, %v358, 0.0
  %376 = vadd.xlane.f32.xlu0 %v375
  %v377 = vpop.xlane.xlu0 %376
  %v378 = vsel %vm362, %v359, 0.0
  %379 = vadd.xlane.f32.xlu0 %v378
  %v380 = vpop.xlane.xlu0 %379
  %v381 = vsel %vm362, %v360, 0.0
  %382 = vadd.xlane.f32.xlu0 %v381
  %v383 = vpop.xlane.xlu0 %382
  %v384 = vsel %vm362, %v361, 0.0
  %385 = vadd.xlane.f32.xlu0 %v384
  %v386 = vpop.xlane.xlu0 %385
  %v387 = vadd.f32 %v365, %v316
  %v388 = vadd.f32 %v368, %v321
  %v389 = vadd.f32 %v371, %v326
  %v390 = vadd.f32 %v374, %v331
  %v391 = vadd.f32 %v377, %v336
  %v392 = vadd.f32 %v380, %v341
  %v393 = vadd.f32 %v383, %v346
  %v394 = vadd.f32 %v386, %v351
  %v395 = vadd.f32 %v387, %v59
  %v396 = vadd.f32 %v388, %v60
  %v397 = vadd.f32 %v389, %v61
  %v398 = vadd.f32 %v390, %v62
  %v399 = vadd.f32 %v391, %v63
  %v400 = vadd.f32 %v392, %v64
  %v401 = vadd.f32 %v393, %v65
  %v402 = vadd.f32 %v394, %v66
  %vm403 = vcmp.gt.f32.partialorder %v395, 0.0
  %vm404 = vcmp.gt.f32.partialorder %v396, 0.0
  %vm405 = vcmp.gt.f32.partialorder %v397, 0.0
  %vm406 = vcmp.gt.f32.partialorder %v398, 0.0
  %vm407 = vcmp.gt.f32.partialorder %v399, 0.0
  %vm408 = vcmp.gt.f32.partialorder %v400, 0.0
  %vm409 = vcmp.gt.f32.partialorder %v401, 0.0
  %vm410 = vcmp.gt.f32.partialorder %v402, 0.0
  %v411 = vmul.f32 %v395, 0.2
  %v412 = vmul.f32 %v396, 0.2
  %v413 = vmul.f32 %v397, 0.2
  %v414 = vmul.f32 %v398, 0.2
  %v415 = vmul.f32 %v399, 0.2
  %v416 = vmul.f32 %v400, 0.2
  %v417 = vmul.f32 %v401, 0.2
  %v418 = vmul.f32 %v402, 0.2
  %v419 = vsel %vm403, %v395, %v411
  %v420 = vsel %vm404, %v396, %v412
  %v421 = vsel %vm405, %v397, %v413
  %v422 = vsel %vm406, %v398, %v414
  %v423 = vsel %vm407, %v399, %v415
  %v424 = vsel %vm408, %v400, %v416
  %v425 = vsel %vm409, %v401, %v417
  %v426 = vsel %vm410, %v402, %v418
  %vm427 = vcmp.gt.f32.partialorder %v14, 0.0
  %vm428 = vcmp.gt.f32.partialorder %v15, 0.0
  %vm429 = vcmp.gt.f32.partialorder %v16, 0.0
  %vm430 = vcmp.gt.f32.partialorder %v17, 0.0
  %vm431 = vcmp.gt.f32.partialorder %v18, 0.0
  %vm432 = vcmp.gt.f32.partialorder %v19, 0.0
  %vm433 = vcmp.gt.f32.partialorder %v20, 0.0
  %vm434 = vcmp.gt.f32.partialorder %v21, 0.0
  %v435 = vsel %vm427, %v419, -1e+30
  %v436 = vsel %vm428, %v420, -1e+30
  %v437 = vsel %vm429, %v421, -1e+30
  %v438 = vsel %vm430, %v422, -1e+30
  %v439 = vsel %vm431, %v423, -1e+30
  %v440 = vsel %vm432, %v424, -1e+30
  %v441 = vsel %vm433, %v425, -1e+30
  %v442 = vsel %vm434, %v426, -1e+30
  %v443 = vsel %vm362, %v435, -inf
  %444 = vmax.xlane.f32.xlu0 %v443
  %v445 = vpop.xlane.xlu0 %444
  %v446 = vsel %vm362, %v436, -inf
  %447 = vmax.xlane.f32.xlu0 %v446
  %v448 = vpop.xlane.xlu0 %447
  %v449 = vsel %vm362, %v437, -inf
  %450 = vmax.xlane.f32.xlu0 %v449
  %v451 = vpop.xlane.xlu0 %450
  %v452 = vsel %vm362, %v438, -inf
  %453 = vmax.xlane.f32.xlu0 %v452
  %v454 = vpop.xlane.xlu0 %453
  %v455 = vsel %vm362, %v439, -inf
  %456 = vmax.xlane.f32.xlu0 %v455
  %v457 = vpop.xlane.xlu0 %456
  %v458 = vsel %vm362, %v440, -inf
  %459 = vmax.xlane.f32.xlu0 %v458
  %v460 = vpop.xlane.xlu0 %459
  %v461 = vsel %vm362, %v441, -inf
  %462 = vmax.xlane.f32.xlu0 %v461
  %v463 = vpop.xlane.xlu0 %462
  %v464 = vsel %vm362, %v442, -inf
  %465 = vmax.xlane.f32.xlu0 %v464
  %v466 = vpop.xlane.xlu0 %465
  %v467 = vsub.f32 %v435, %v445
  %v468 = vsub.f32 %v436, %v448
  %v469 = vsub.f32 %v437, %v451
  %v470 = vsub.f32 %v438, %v454
  %v471 = vsub.f32 %v439, %v457
  %v472 = vsub.f32 %v440, %v460
  %v473 = vsub.f32 %v441, %v463
  %v474 = vsub.f32 %v442, %v466
  %v475 = vmul.f32 %v467, 1.442695
  %v476 = vpow.pop %v475
  %v477 = vmul.f32 %v468, 1.442695
  %v478 = vpow.pop %v477
  %v479 = vmul.f32 %v469, 1.442695
  %v480 = vpow.pop %v479
  %v481 = vmul.f32 %v470, 1.442695
  %v482 = vpow.pop %v481
  %v483 = vmul.f32 %v471, 1.442695
  %v484 = vpow.pop %v483
  %v485 = vmul.f32 %v472, 1.442695
  %v486 = vpow.pop %v485
  %v487 = vmul.f32 %v473, 1.442695
  %v488 = vpow.pop %v487
  %v489 = vmul.f32 %v474, 1.442695
  %v490 = vpow.pop %v489
  %v491 = vmul.f32 %v476, %v14
  %v492 = vmul.f32 %v478, %v15
  %v493 = vmul.f32 %v480, %v16
  %v494 = vmul.f32 %v482, %v17
  %v495 = vmul.f32 %v484, %v18
  %v496 = vmul.f32 %v486, %v19
  %v497 = vmul.f32 %v488, %v20
  %v498 = vmul.f32 %v490, %v21
  %v499 = vsel %vm362, %v491, 0.0
  %500 = vadd.xlane.f32.xlu0 %v499
  %v501 = vpop.xlane.xlu0 %500
  %v502 = vsel %vm362, %v492, 0.0
  %503 = vadd.xlane.f32.xlu0 %v502
  %v504 = vpop.xlane.xlu0 %503
  %v505 = vsel %vm362, %v493, 0.0
  %506 = vadd.xlane.f32.xlu0 %v505
  %v507 = vpop.xlane.xlu0 %506
  %v508 = vsel %vm362, %v494, 0.0
  %509 = vadd.xlane.f32.xlu0 %v508
  %v510 = vpop.xlane.xlu0 %509
  %v511 = vsel %vm362, %v495, 0.0
  %512 = vadd.xlane.f32.xlu0 %v511
  %v513 = vpop.xlane.xlu0 %512
  %v514 = vsel %vm362, %v496, 0.0
  %515 = vadd.xlane.f32.xlu0 %v514
  %v516 = vpop.xlane.xlu0 %515
  %v517 = vsel %vm362, %v497, 0.0
  %518 = vadd.xlane.f32.xlu0 %v517
  %v519 = vpop.xlane.xlu0 %518
  %v520 = vsel %vm362, %v498, 0.0
  %521 = vadd.xlane.f32.xlu0 %v520
  %v522 = vpop.xlane.xlu0 %521
  %vm523 = vcmp.gt.f32.partialorder %v501, 0.0
  %vm524 = vcmp.gt.f32.partialorder %v504, 0.0
  %vm525 = vcmp.gt.f32.partialorder %v507, 0.0
  %vm526 = vcmp.gt.f32.partialorder %v510, 0.0
  %vm527 = vcmp.gt.f32.partialorder %v513, 0.0
  %vm528 = vcmp.gt.f32.partialorder %v516, 0.0
  %vm529 = vcmp.gt.f32.partialorder %v519, 0.0
  %vm530 = vcmp.gt.f32.partialorder %v522, 0.0
  %v531 = vsel %vm523, %v501, 1.0
  %v532 = vsel %vm524, %v504, 1.0
  %v533 = vsel %vm525, %v507, 1.0
  %v534 = vsel %vm526, %v510, 1.0
  %v535 = vsel %vm527, %v513, 1.0
  %v536 = vsel %vm528, %v516, 1.0
  %v537 = vsel %vm529, %v519, 1.0
  %v538 = vsel %vm530, %v522, 1.0
  %v539 = vrcp.pop %v531
  %v540 = vrcp.pop %v532
  %v541 = vrcp.pop %v533
  %v542 = vrcp.pop %v534
  %v543 = vrcp.pop %v535
  %v544 = vrcp.pop %v536
  %v545 = vrcp.pop %v537
  %v546 = vrcp.pop %v538
  %v547 = vmul.f32 %v531, %v539
  %v548 = vmul.f32 %v532, %v540
  %v549 = vmul.f32 %v533, %v541
  %v550 = vmul.f32 %v534, %v542
  %v551 = vmul.f32 %v535, %v543
  %v552 = vmul.f32 %v536, %v544
  %v553 = vmul.f32 %v537, %v545
  %v554 = vmul.f32 %v538, %v546
  %v555 = vsub.f32 2.0, %v547
  %v556 = vsub.f32 2.0, %v548
  %v557 = vsub.f32 2.0, %v549
  %v558 = vsub.f32 2.0, %v550
  %v559 = vsub.f32 2.0, %v551
  %v560 = vsub.f32 2.0, %v552
  %v561 = vsub.f32 2.0, %v553
  %v562 = vsub.f32 2.0, %v554
  %v563 = vmul.f32 %v539, %v555
  %v564 = vmul.f32 %v540, %v556
  %v565 = vmul.f32 %v541, %v557
  %v566 = vmul.f32 %v542, %v558
  %v567 = vmul.f32 %v543, %v559
  %v568 = vmul.f32 %v544, %v560
  %v569 = vmul.f32 %v545, %v561
  %v570 = vmul.f32 %v546, %v562
  %v571 = vmul.f32 %v491, %v563
  %v572 = vmul.f32 %v492, %v564
  %v573 = vmul.f32 %v493, %v565
  %v574 = vmul.f32 %v494, %v566
  %v575 = vmul.f32 %v495, %v567
  %v576 = vmul.f32 %v496, %v568
  %v577 = vmul.f32 %v497, %v569
  %v578 = vmul.f32 %v498, %v570
  %v580 = vsel %vm362, %v571, 0
  %v583 = vsel %vm362, %v572, 0
  %v586 = vsel %vm362, %v573, 0
  %v589 = vsel %vm362, %v574, 0
  %v592 = vsel %vm362, %v575, 0
  %v595 = vsel %vm362, %v576, 0
  %v598 = vsel %vm362, %v577, 0
  %v601 = vsel %vm362, %v578, 0
  %603 = vmatprep.subr.mxu0 0.0
  %604 = vmatpush1.msra.mxu0 %v146
  %605 = vmatprep.subr.mxu0 0.0
  %606 = vmatpush1.msra.mxu0 %v151
  %607 = vmatprep.subr.mxu0 0.0
  %608 = vmatpush1.msra.mxu0 0.0
  %609 = vmatprep.subr.mxu0 0.0
  %610 = vmatpush1.msra.mxu0 0.0
  %611 = vmatprep.subr.mxu0 0.0
  %612 = vmatpush1.msra.mxu0 0.0
  %613 = vmatprep.subr.mxu0 0.0
  %614 = vmatpush1.msra.mxu0 0.0
  %615 = vmatprep.subr.mxu0 0.0
  %616 = vmatpush1.msra.mxu0 0.0
  %617 = vmatprep.subr.mxu0 0.0
  %618 = vmatpush1.msra.mxu0 0.0
  %619 = vmatprep.subr.mxu0 0.0
  %620 = vmatpush1.msra.mxu0 0.0
  %621 = vmatprep.subr.mxu0 0.0
  %622 = vmatpush1.msra.mxu0 0.0
  %623 = vmatprep.subr.mxu0 0.0
  %624 = vmatpush1.msra.mxu0 0.0
  %625 = vmatprep.subr.mxu0 0.0
  %626 = vmatpush1.msra.mxu0 0.0
  %627 = vmatprep.subr.mxu0 0.0
  %628 = vmatpush1.msra.mxu0 0.0
  %629 = vmatprep.subr.mxu0 0.0
  %630 = vmatpush1.msra.mxu0 0.0
  %631 = vmatprep.subr.mxu0 0.0
  %632 = vmatpush1.msra.mxu0 0.0
  %633 = vmatprep.subr.mxu0 0.0
  %634 = vmatpush1.msra.mxu0 0.0
  %635 = vmatprep.subr.mxu0 0.0
  %636 = vmatpush1.msra.mxu0 0.0
  %637 = vmatprep.subr.mxu0 0.0
  %638 = vmatpush1.msra.mxu0 0.0
  %639 = vmatprep.subr.mxu0 0.0
  %640 = vmatpush1.msra.mxu0 0.0
  %641 = vmatprep.subr.mxu0 0.0
  %642 = vmatpush1.msra.mxu0 0.0
  %643 = vmatprep.subr.mxu0 0.0
  %644 = vmatpush1.msra.mxu0 0.0
  %645 = vmatprep.subr.mxu0 0.0
  %646 = vmatpush1.msra.mxu0 0.0
  %647 = vmatprep.subr.mxu0 0.0
  %648 = vmatpush1.msra.mxu0 0.0
  %649 = vmatprep.subr.mxu0 0.0
  %650 = vmatpush1.msra.mxu0 0.0
  %651 = vmatprep.subr.mxu0 0.0
  %652 = vmatpush1.msra.mxu0 0.0
  %653 = vmatprep.subr.mxu0 0.0
  %654 = vmatpush1.msra.mxu0 0.0
  %655 = vmatprep.subr.mxu0 0.0
  %656 = vmatpush1.msra.mxu0 0.0
  %657 = vmatprep.subr.mxu0 0.0
  %658 = vmatpush1.msra.mxu0 0.0
  %659 = vmatprep.subr.mxu0 0.0
  %660 = vmatpush1.msra.mxu0 0.0
  %661 = vmatprep.subr.mxu0 0.0
  %662 = vmatpush1.msra.mxu0 0.0
  %663 = vmatprep.subr.mxu0 0.0
  %664 = vmatpush1.msra.mxu0 0.0
  %665 = vmatprep.subr.mxu0 0.0
  %666 = vmatpush1.msra.mxu0 0.0
  %667 = vmatprep.mubr.f32.mxu0 0.0
  %668 = vmatmul.mubr.f32.gmra.mrb[0].mxu0 %v580
  %v669 = vpop.f32.mrb[0].mxu0
  %v670 = vadd.f32 0.0, %v669
  %v671 = vpop.f32.mrb[0].mxu0
  %672 = vmatprep.mubr.f32.mxu0 0.0
  %673 = vmatmul.mubr.f32.gmra.mrb[0].mxu0 %v583
  %v674 = vpop.f32.mrb[0].mxu0
  %v675 = vadd.f32 0.0, %v674
  %v676 = vpop.f32.mrb[0].mxu0
  %677 = vmatprep.mubr.f32.mxu0 0.0
  %678 = vmatmul.mubr.f32.gmra.mrb[0].mxu0 %v586
  %v679 = vpop.f32.mrb[0].mxu0
  %v680 = vadd.f32 0.0, %v679
  %v681 = vpop.f32.mrb[0].mxu0
  %682 = vmatprep.mubr.f32.mxu0 0.0
  %683 = vmatmul.mubr.f32.gmra.mrb[0].mxu0 %v589
  %v684 = vpop.f32.mrb[0].mxu0
  %v685 = vadd.f32 0.0, %v684
  %v686 = vpop.f32.mrb[0].mxu0
  %687 = vmatprep.mubr.f32.mxu0 0.0
  %688 = vmatmul.mubr.f32.gmra.mrb[0].mxu0 %v592
  %v689 = vpop.f32.mrb[0].mxu0
  %v690 = vadd.f32 0.0, %v689
  %v691 = vpop.f32.mrb[0].mxu0
  %692 = vmatprep.mubr.f32.mxu0 0.0
  %693 = vmatmul.mubr.f32.gmra.mrb[0].mxu0 %v595
  %v694 = vpop.f32.mrb[0].mxu0
  %v695 = vadd.f32 0.0, %v694
  %v696 = vpop.f32.mrb[0].mxu0
  %697 = vmatprep.mubr.f32.mxu0 0.0
  %698 = vmatmul.mubr.f32.gmra.mrb[0].mxu0 %v598
  %v699 = vpop.f32.mrb[0].mxu0
  %v700 = vadd.f32 0.0, %v699
  %v701 = vpop.f32.mrb[0].mxu0
  %702 = vmatprep.mubr.f32.mxu0 0.0
  %703 = vmatmul.mubr.f32.gmra.mrb[0].mxu0 %v601
  %v704 = vpop.f32.mrb[0].mxu0
  %v705 = vadd.f32 0.0, %v704
  %v706 = vpop.f32.mrb[0].mxu0
  %707 = vdwg.mxu0
  %v708 = vmul.f32 %v670, %v32
  %v709 = vmul.f32 %v675, %v33
  %v710 = vmul.f32 %v680, %v34
  %v711 = vmul.f32 %v685, %v35
  %v712 = vmul.f32 %v690, %v36
  %v713 = vmul.f32 %v695, %v37
  %v714 = vmul.f32 %v700, %v38
  %v715 = vmul.f32 %v705, %v39
  %v716 = vlaneseq
  %v717 = vshrl.u32 %v716, 7
  %v718 = vsub.s32 1, %v717
  %v719 = vrot.slane %v67, %v718
  %vm720 = vcmask 523264
  %v722 = vsel %vm720, %v30, 0
  %v725 = vsel %vm720, %v31, 0
  %727 = vmatprep.subr.mxu0 0.0
  %728 = vmatpush1.msra.mxu0 %v708
  %729 = vmatprep.subr.mxu0 0.0
  %730 = vmatpush1.msra.mxu0 %v709
  %731 = vmatprep.subr.mxu0 0.0
  %732 = vmatpush1.msra.mxu0 %v710
  %733 = vmatprep.subr.mxu0 0.0
  %734 = vmatpush1.msra.mxu0 %v711
  %735 = vmatprep.subr.mxu0 0.0
  %736 = vmatpush1.msra.mxu0 %v712
  %737 = vmatprep.subr.mxu0 0.0
  %738 = vmatpush1.msra.mxu0 %v713
  %739 = vmatprep.subr.mxu0 0.0
  %740 = vmatpush1.msra.mxu0 %v714
  %741 = vmatprep.subr.mxu0 0.0
  %742 = vmatpush1.msra.mxu0 %v715
  %743 = vmatprep.subr.mxu0 0.0
  %744 = vmatpush1.msra.mxu0 0.0
  %745 = vmatprep.subr.mxu0 0.0
  %746 = vmatpush1.msra.mxu0 0.0
  %747 = vmatprep.subr.mxu0 0.0
  %748 = vmatpush1.msra.mxu0 0.0
  %749 = vmatprep.subr.mxu0 0.0
  %750 = vmatpush1.msra.mxu0 0.0
  %751 = vmatprep.subr.mxu0 0.0
  %752 = vmatpush1.msra.mxu0 0.0
  %753 = vmatprep.subr.mxu0 0.0
  %754 = vmatpush1.msra.mxu0 0.0
  %755 = vmatprep.subr.mxu0 0.0
  %756 = vmatpush1.msra.mxu0 0.0
  %757 = vmatprep.subr.mxu0 0.0
  %758 = vmatpush1.msra.mxu0 0.0
  %759 = vmatprep.subr.mxu0 0.0
  %760 = vmatpush1.msra.mxu0 0.0
  %761 = vmatprep.subr.mxu0 0.0
  %762 = vmatpush1.msra.mxu0 0.0
  %763 = vmatprep.subr.mxu0 0.0
  %764 = vmatpush1.msra.mxu0 0.0
  %765 = vmatprep.subr.mxu0 0.0
  %766 = vmatpush1.msra.mxu0 0.0
  %767 = vmatprep.subr.mxu0 0.0
  %768 = vmatpush1.msra.mxu0 0.0
  %769 = vmatprep.subr.mxu0 0.0
  %770 = vmatpush1.msra.mxu0 0.0
  %771 = vmatprep.subr.mxu0 0.0
  %772 = vmatpush1.msra.mxu0 0.0
  %773 = vmatprep.subr.mxu0 0.0
  %774 = vmatpush1.msra.mxu0 0.0
  %775 = vmatprep.subr.mxu0 0.0
  %776 = vmatpush1.msra.mxu0 0.0
  %777 = vmatprep.subr.mxu0 0.0
  %778 = vmatpush1.msra.mxu0 0.0
  %779 = vmatprep.subr.mxu0 0.0
  %780 = vmatpush1.msra.mxu0 0.0
  %781 = vmatprep.subr.mxu0 0.0
  %782 = vmatpush1.msra.mxu0 0.0
  %783 = vmatprep.subr.mxu0 0.0
  %784 = vmatpush1.msra.mxu0 0.0
  %785 = vmatprep.subr.mxu0 0.0
  %786 = vmatpush1.msra.mxu0 0.0
  %787 = vmatprep.subr.mxu0 0.0
  %788 = vmatpush1.msra.mxu0 0.0
  %789 = vmatprep.subr.mxu0 0.0
  %790 = vmatpush1.msra.mxu0 0.0
  %791 = vmatprep.mubr.f32.mxu0 0.0
  %792 = vmatmul.mubr.f32.gmra.mrb[0].mxu0 %v722
  %v793 = vpop.f32.mrb[0].mxu0
  %v794 = vadd.f32 %v719, %v793
  %v795 = vpop.f32.mrb[0].mxu0
  %796 = vmatprep.mubr.f32.mxu0 0.0
  %797 = vmatmul.mubr.f32.gmra.mrb[0].mxu0 %v725
  %v798 = vpop.f32.mrb[0].mxu0
  %v799 = vadd.f32 %v719, %v798
  %v800 = vpop.f32.mrb[0].mxu0
  %801 = vdwg.mxu0
  %vm802 = vcmp.gt.f32.partialorder %v794, 0.0
  %vm803 = vcmp.gt.f32.partialorder %v799, 0.0
  %v804 = vmin.f32 %v794, 0.0
  %v805 = vmin.f32 %v799, 0.0
  %v806 = vmul.f32 %v804, 1.442695
  %v807 = vpow.pop %v806
  %v808 = vmul.f32 %v805, 1.442695
  %v809 = vpow.pop %v808
  %v810 = vsub.f32 %v807, 1.0
  %v811 = vsub.f32 %v809, 1.0
  %v812 = vsel %vm802, %v794, %v810
  %v813 = vsel %vm803, %v799, %v811
  %v814 = vld [vmem:[%s2 + $0xe8] sm:$0xff]
  %v815 = vld [vmem:[%s2 + $0xf0] sm:$0xff]
  %v816 = vld [vmem:[%s2 + $0xf8] sm:$0xff]
  %v817 = vld [vmem:[%s2 + $0x100] sm:$0xff]
  %v818 = vld [vmem:[%s2 + $0x108] sm:$0xff]
  %v819 = vld [vmem:[%s2 + $0x110] sm:$0xff]
  %v820 = vld [vmem:[%s2 + $0x118] sm:$0xff]
  %v821 = vld [vmem:[%s2 + $0x120] sm:$0xff]
  %v822 = vld [vmem:[%s2 + $0x128] sm:$0xff]
  %v823 = vld [vmem:[%s2 + $0x130] sm:$0xff]
  %v824 = vld [vmem:[%s2 + $0x138] sm:$0xff]
  %v825 = vld [vmem:[%s2 + $0x140] sm:$0xff]
  %v826 = vld [vmem:[%s2 + $0x148] sm:$0xff]
  %v827 = vld [vmem:[%s2 + $0x150] sm:$0xff]
  %v828 = vld [vmem:[%s2 + $0x158] sm:$0xff]
  %v829 = vld [vmem:[%s2 + $0x160] sm:$0xff]
  %v830 = vld [vmem:[%s2 + $0x168] sm:$0xff]
  %v831 = vld [vmem:[%s2 + $0x170] sm:$0xff]
  %v832 = vld [vmem:[%s2 + $0x178] sm:$0xff]
  %v833 = vld [vmem:[%s2 + $0x180] sm:$0xff]
  %v834 = vld [vmem:[%s2 + $0x188] sm:$0xff]
  %v835 = vld [vmem:[%s2 + $0x190] sm:$0xff]
  %v836 = vld [vmem:[%s2 + $0x198] sm:$0xff]
  %v837 = vld [vmem:[%s2 + $0x1a0] sm:$0xff]
  %v838 = vld [vmem:[%s2 + $0x1a8] sm:$0xff]
  %v839 = vld [vmem:[%s2 + $0x1b0] sm:$0xff]
  %v840 = vld [vmem:[%s2 + $0x1b8] sm:$0xff]
  %v841 = vld [vmem:[%s2 + $0x1c0] sm:$0xff]
  %v842 = vld [vmem:[%s2 + $0x1c8] sm:$0xff]
  %v843 = vlaneseq
  %v844 = vshrl.u32 %v843, 7
  %v845 = vsub.s32 0, %v844
  %v846 = vrot.slane %v842, %v845
  %v848 = vsel %vm154, %v812, 0
  %v851 = vsel %vm154, %v813, 0
  %853 = vmatprep.subr.mxu0 0.0
  %854 = vmatpush1.msra.mxu0 %v814
  %855 = vmatprep.subr.mxu0 0.0
  %856 = vmatpush1.msra.mxu0 %v815
  %857 = vmatprep.subr.mxu0 0.0
  %858 = vmatpush1.msra.mxu0 %v816
  %859 = vmatprep.subr.mxu0 0.0
  %860 = vmatpush1.msra.mxu0 %v817
  %861 = vmatprep.subr.mxu0 0.0
  %862 = vmatpush1.msra.mxu0 0.0
  %863 = vmatprep.subr.mxu0 0.0
  %864 = vmatpush1.msra.mxu0 0.0
  %865 = vmatprep.subr.mxu0 0.0
  %866 = vmatpush1.msra.mxu0 0.0
  %867 = vmatprep.subr.mxu0 0.0
  %868 = vmatpush1.msra.mxu0 0.0
  %869 = vmatprep.subr.mxu0 0.0
  %870 = vmatpush1.msra.mxu0 0.0
  %871 = vmatprep.subr.mxu0 0.0
  %872 = vmatpush1.msra.mxu0 0.0
  %873 = vmatprep.subr.mxu0 0.0
  %874 = vmatpush1.msra.mxu0 0.0
  %875 = vmatprep.subr.mxu0 0.0
  %876 = vmatpush1.msra.mxu0 0.0
  %877 = vmatprep.subr.mxu0 0.0
  %878 = vmatpush1.msra.mxu0 0.0
  %879 = vmatprep.subr.mxu0 0.0
  %880 = vmatpush1.msra.mxu0 0.0
  %881 = vmatprep.subr.mxu0 0.0
  %882 = vmatpush1.msra.mxu0 0.0
  %883 = vmatprep.subr.mxu0 0.0
  %884 = vmatpush1.msra.mxu0 0.0
  %885 = vmatprep.subr.mxu0 0.0
  %886 = vmatpush1.msra.mxu0 0.0
  %887 = vmatprep.subr.mxu0 0.0
  %888 = vmatpush1.msra.mxu0 0.0
  %889 = vmatprep.subr.mxu0 0.0
  %890 = vmatpush1.msra.mxu0 0.0
  %891 = vmatprep.subr.mxu0 0.0
  %892 = vmatpush1.msra.mxu0 0.0
  %893 = vmatprep.subr.mxu0 0.0
  %894 = vmatpush1.msra.mxu0 0.0
  %895 = vmatprep.subr.mxu0 0.0
  %896 = vmatpush1.msra.mxu0 0.0
  %897 = vmatprep.subr.mxu0 0.0
  %898 = vmatpush1.msra.mxu0 0.0
  %899 = vmatprep.subr.mxu0 0.0
  %900 = vmatpush1.msra.mxu0 0.0
  %901 = vmatprep.subr.mxu0 0.0
  %902 = vmatpush1.msra.mxu0 0.0
  %903 = vmatprep.subr.mxu0 0.0
  %904 = vmatpush1.msra.mxu0 0.0
  %905 = vmatprep.subr.mxu0 0.0
  %906 = vmatpush1.msra.mxu0 0.0
  %907 = vmatprep.subr.mxu0 0.0
  %908 = vmatpush1.msra.mxu0 0.0
  %909 = vmatprep.subr.mxu0 0.0
  %910 = vmatpush1.msra.mxu0 0.0
  %911 = vmatprep.subr.mxu0 0.0
  %912 = vmatpush1.msra.mxu0 0.0
  %913 = vmatprep.subr.mxu0 0.0
  %914 = vmatpush1.msra.mxu0 0.0
  %915 = vmatprep.subr.mxu0 0.0
  %916 = vmatpush1.msra.mxu0 0.0
  %917 = vmatprep.mubr.f32.mxu0 0.0
  %918 = vmatmul.mubr.f32.gmra.mrb[0].mxu0 %v848
  %v919 = vpop.f32.mrb[0].mxu0
  %v920 = vadd.f32 %v846, %v919
  %v921 = vpop.f32.mrb[0].mxu0
  %922 = vmatprep.mubr.f32.mxu0 0.0
  %923 = vmatmul.mubr.f32.gmra.mrb[0].mxu0 %v851
  %v924 = vpop.f32.mrb[0].mxu0
  %v925 = vadd.f32 %v846, %v924
  %v926 = vpop.f32.mrb[0].mxu0
  %927 = vdwg.mxu0
  %v929 = vsel %vm154, %v818, 0
  %v932 = vsel %vm154, %v819, 0
  %v935 = vsel %vm154, %v820, 0
  %v938 = vsel %vm154, %v821, 0
  %v941 = vsel %vm154, %v822, 0
  %v944 = vsel %vm154, %v823, 0
  %v947 = vsel %vm154, %v824, 0
  %v950 = vsel %vm154, %v825, 0
  %v953 = vsel %vm154, %v826, 0
  %v956 = vsel %vm154, %v827, 0
  %v959 = vsel %vm154, %v828, 0
  %v962 = vsel %vm154, %v829, 0
  %v965 = vsel %vm154, %v830, 0
  %v968 = vsel %vm154, %v831, 0
  %v971 = vsel %vm154, %v832, 0
  %v974 = vsel %vm154, %v833, 0
  %v977 = vsel %vm154, %v920, 0
  %v980 = vsel %vm154, %v925, 0
  %982 = vmatprep.subr.mxu0 0.0
  %983 = vmatpush1.xpose.msra.mxu0 %v977
  %984 = vmatprep.subr.mxu0 0.0
  %985 = vmatpush1.xpose.msra.mxu0 %v980
  %986 = vmatprep.subr.mxu0 0.0
  %987 = vmatpush1.xpose.msra.mxu0 0.0
  %988 = vmatprep.subr.mxu0 0.0
  %989 = vmatpush1.xpose.msra.mxu0 0.0
  %990 = vmatprep.subr.mxu0 0.0
  %991 = vmatpush1.xpose.msra.mxu0 0.0
  %992 = vmatprep.subr.mxu0 0.0
  %993 = vmatpush1.xpose.msra.mxu0 0.0
  %994 = vmatprep.subr.mxu0 0.0
  %995 = vmatpush1.xpose.msra.mxu0 0.0
  %996 = vmatprep.subr.mxu0 0.0
  %997 = vmatpush1.xpose.msra.mxu0 0.0
  %998 = vmatprep.subr.mxu0 0.0
  %999 = vmatpush1.xpose.msra.mxu0 0.0
  %1000 = vmatprep.subr.mxu0 0.0
  %1001 = vmatpush1.xpose.msra.mxu0 0.0
  %1002 = vmatprep.subr.mxu0 0.0
  %1003 = vmatpush1.xpose.msra.mxu0 0.0
  %1004 = vmatprep.subr.mxu0 0.0
  %1005 = vmatpush1.xpose.msra.mxu0 0.0
  %1006 = vmatprep.subr.mxu0 0.0
  %1007 = vmatpush1.xpose.msra.mxu0 0.0
  %1008 = vmatprep.subr.mxu0 0.0
  %1009 = vmatpush1.xpose.msra.mxu0 0.0
  %1010 = vmatprep.subr.mxu0 0.0
  %1011 = vmatpush1.xpose.msra.mxu0 0.0
  %1012 = vmatprep.subr.mxu0 0.0
  %1013 = vmatpush1.xpose.msra.mxu0 0.0
  %1014 = vmatprep.subr.mxu0 0.0
  %1015 = vmatpush1.xpose.msra.mxu0 0.0
  %1016 = vmatprep.subr.mxu0 0.0
  %1017 = vmatpush1.xpose.msra.mxu0 0.0
  %1018 = vmatprep.subr.mxu0 0.0
  %1019 = vmatpush1.xpose.msra.mxu0 0.0
  %1020 = vmatprep.subr.mxu0 0.0
  %1021 = vmatpush1.xpose.msra.mxu0 0.0
  %1022 = vmatprep.subr.mxu0 0.0
  %1023 = vmatpush1.xpose.msra.mxu0 0.0
  %1024 = vmatprep.subr.mxu0 0.0
  %1025 = vmatpush1.xpose.msra.mxu0 0.0
  %1026 = vmatprep.subr.mxu0 0.0
  %1027 = vmatpush1.xpose.msra.mxu0 0.0
  %1028 = vmatprep.subr.mxu0 0.0
  %1029 = vmatpush1.xpose.msra.mxu0 0.0
  %1030 = vmatprep.subr.mxu0 0.0
  %1031 = vmatpush1.xpose.msra.mxu0 0.0
  %1032 = vmatprep.subr.mxu0 0.0
  %1033 = vmatpush1.xpose.msra.mxu0 0.0
  %1034 = vmatprep.subr.mxu0 0.0
  %1035 = vmatpush1.xpose.msra.mxu0 0.0
  %1036 = vmatprep.subr.mxu0 0.0
  %1037 = vmatpush1.xpose.msra.mxu0 0.0
  %1038 = vmatprep.subr.mxu0 0.0
  %1039 = vmatpush1.xpose.msra.mxu0 0.0
  %1040 = vmatprep.subr.mxu0 0.0
  %1041 = vmatpush1.xpose.msra.mxu0 0.0
  %1042 = vmatprep.subr.mxu0 0.0
  %1043 = vmatpush1.xpose.msra.mxu0 0.0
  %1044 = vmatprep.subr.mxu0 0.0
  %1045 = vmatpush1.xpose.msra.mxu0 0.0
  %1046 = vmatprep.mubr.f32.mxu0 0.0
  %1047 = vmatmul.mubr.f32.gmra.mrb[0].mxu0 %v929
  %v1048 = vpop.f32.mrb[0].mxu0
  %v1049 = vadd.f32 0.0, %v1048
  %v1050 = vpop.f32.mrb[0].mxu0
  %1051 = vmatprep.mubr.f32.mxu0 0.0
  %1052 = vmatmul.mubr.f32.gmra.mrb[0].mxu0 %v932
  %v1053 = vpop.f32.mrb[0].mxu0
  %v1054 = vadd.f32 0.0, %v1053
  %v1055 = vpop.f32.mrb[0].mxu0
  %1056 = vmatprep.mubr.f32.mxu0 0.0
  %1057 = vmatmul.mubr.f32.gmra.mrb[0].mxu0 %v935
  %v1058 = vpop.f32.mrb[0].mxu0
  %v1059 = vadd.f32 0.0, %v1058
  %v1060 = vpop.f32.mrb[0].mxu0
  %1061 = vmatprep.mubr.f32.mxu0 0.0
  %1062 = vmatmul.mubr.f32.gmra.mrb[0].mxu0 %v938
  %v1063 = vpop.f32.mrb[0].mxu0
  %v1064 = vadd.f32 0.0, %v1063
  %v1065 = vpop.f32.mrb[0].mxu0
  %1066 = vmatprep.mubr.f32.mxu0 0.0
  %1067 = vmatmul.mubr.f32.gmra.mrb[0].mxu0 %v941
  %v1068 = vpop.f32.mrb[0].mxu0
  %v1069 = vadd.f32 0.0, %v1068
  %v1070 = vpop.f32.mrb[0].mxu0
  %1071 = vmatprep.mubr.f32.mxu0 0.0
  %1072 = vmatmul.mubr.f32.gmra.mrb[0].mxu0 %v944
  %v1073 = vpop.f32.mrb[0].mxu0
  %v1074 = vadd.f32 0.0, %v1073
  %v1075 = vpop.f32.mrb[0].mxu0
  %1076 = vmatprep.mubr.f32.mxu0 0.0
  %1077 = vmatmul.mubr.f32.gmra.mrb[0].mxu0 %v947
  %v1078 = vpop.f32.mrb[0].mxu0
  %v1079 = vadd.f32 0.0, %v1078
  %v1080 = vpop.f32.mrb[0].mxu0
  %1081 = vmatprep.mubr.f32.mxu0 0.0
  %1082 = vmatmul.mubr.f32.gmra.mrb[0].mxu0 %v950
  %v1083 = vpop.f32.mrb[0].mxu0
  %v1084 = vadd.f32 0.0, %v1083
  %v1085 = vpop.f32.mrb[0].mxu0
  %1086 = vmatprep.mubr.f32.mxu0 0.0
  %1087 = vmatmul.mubr.f32.gmra.mrb[0].mxu0 %v953
  %v1088 = vpop.f32.mrb[0].mxu0
  %v1089 = vadd.f32 0.0, %v1088
  %v1090 = vpop.f32.mrb[0].mxu0
  %1091 = vmatprep.mubr.f32.mxu0 0.0
  %1092 = vmatmul.mubr.f32.gmra.mrb[0].mxu0 %v956
  %v1093 = vpop.f32.mrb[0].mxu0
  %v1094 = vadd.f32 0.0, %v1093
  %v1095 = vpop.f32.mrb[0].mxu0
  %1096 = vmatprep.mubr.f32.mxu0 0.0
  %1097 = vmatmul.mubr.f32.gmra.mrb[0].mxu0 %v959
  %v1098 = vpop.f32.mrb[0].mxu0
  %v1099 = vadd.f32 0.0, %v1098
  %v1100 = vpop.f32.mrb[0].mxu0
  %1101 = vmatprep.mubr.f32.mxu0 0.0
  %1102 = vmatmul.mubr.f32.gmra.mrb[0].mxu0 %v962
  %v1103 = vpop.f32.mrb[0].mxu0
  %v1104 = vadd.f32 0.0, %v1103
  %v1105 = vpop.f32.mrb[0].mxu0
  %1106 = vmatprep.mubr.f32.mxu0 0.0
  %1107 = vmatmul.mubr.f32.gmra.mrb[0].mxu0 %v965
  %v1108 = vpop.f32.mrb[0].mxu0
  %v1109 = vadd.f32 0.0, %v1108
  %v1110 = vpop.f32.mrb[0].mxu0
  %1111 = vmatprep.mubr.f32.mxu0 0.0
  %1112 = vmatmul.mubr.f32.gmra.mrb[0].mxu0 %v968
  %v1113 = vpop.f32.mrb[0].mxu0
  %v1114 = vadd.f32 0.0, %v1113
  %v1115 = vpop.f32.mrb[0].mxu0
  %1116 = vmatprep.mubr.f32.mxu0 0.0
  %1117 = vmatmul.mubr.f32.gmra.mrb[0].mxu0 %v971
  %v1118 = vpop.f32.mrb[0].mxu0
  %v1119 = vadd.f32 0.0, %v1118
  %v1120 = vpop.f32.mrb[0].mxu0
  %1121 = vmatprep.mubr.f32.mxu0 0.0
  %1122 = vmatmul.mubr.f32.gmra.mrb[0].mxu0 %v974
  %v1123 = vpop.f32.mrb[0].mxu0
  %v1124 = vadd.f32 0.0, %v1123
  %v1125 = vpop.f32.mrb[0].mxu0
  %1126 = vdwg.mxu0
  %v1127 = vmul.f32 %v1049, %v22
  %v1128 = vmul.f32 %v1054, %v23
  %v1129 = vmul.f32 %v1059, %v24
  %v1130 = vmul.f32 %v1064, %v25
  %v1131 = vmul.f32 %v1069, %v26
  %v1132 = vmul.f32 %v1074, %v27
  %v1133 = vmul.f32 %v1079, %v28
  %v1134 = vmul.f32 %v1084, %v29
  %v1135 = vsel %vm362, %v1127, 0.0
  %1136 = vadd.xlane.f32.xlu0 %v1135
  %v1137 = vpop.xlane.xlu0 %1136
  %v1138 = vsel %vm362, %v1128, 0.0
  %1139 = vadd.xlane.f32.xlu0 %v1138
  %v1140 = vpop.xlane.xlu0 %1139
  %v1141 = vsel %vm362, %v1129, 0.0
  %1142 = vadd.xlane.f32.xlu0 %v1141
  %v1143 = vpop.xlane.xlu0 %1142
  %v1144 = vsel %vm362, %v1130, 0.0
  %1145 = vadd.xlane.f32.xlu0 %v1144
  %v1146 = vpop.xlane.xlu0 %1145
  %v1147 = vsel %vm362, %v1131, 0.0
  %1148 = vadd.xlane.f32.xlu0 %v1147
  %v1149 = vpop.xlane.xlu0 %1148
  %v1150 = vsel %vm362, %v1132, 0.0
  %1151 = vadd.xlane.f32.xlu0 %v1150
  %v1152 = vpop.xlane.xlu0 %1151
  %v1153 = vsel %vm362, %v1133, 0.0
  %1154 = vadd.xlane.f32.xlu0 %v1153
  %v1155 = vpop.xlane.xlu0 %1154
  %v1156 = vsel %vm362, %v1134, 0.0
  %1157 = vadd.xlane.f32.xlu0 %v1156
  %v1158 = vpop.xlane.xlu0 %1157
  %v1159 = vadd.f32 %v1137, %v1089
  %v1160 = vadd.f32 %v1140, %v1094
  %v1161 = vadd.f32 %v1143, %v1099
  %v1162 = vadd.f32 %v1146, %v1104
  %v1163 = vadd.f32 %v1149, %v1109
  %v1164 = vadd.f32 %v1152, %v1114
  %v1165 = vadd.f32 %v1155, %v1119
  %v1166 = vadd.f32 %v1158, %v1124
  %v1167 = vadd.f32 %v1159, %v834
  %v1168 = vadd.f32 %v1160, %v835
  %v1169 = vadd.f32 %v1161, %v836
  %v1170 = vadd.f32 %v1162, %v837
  %v1171 = vadd.f32 %v1163, %v838
  %v1172 = vadd.f32 %v1164, %v839
  %v1173 = vadd.f32 %v1165, %v840
  %v1174 = vadd.f32 %v1166, %v841
  %vm1175 = vcmp.gt.f32.partialorder %v1167, 0.0
  %vm1176 = vcmp.gt.f32.partialorder %v1168, 0.0
  %vm1177 = vcmp.gt.f32.partialorder %v1169, 0.0
  %vm1178 = vcmp.gt.f32.partialorder %v1170, 0.0
  %vm1179 = vcmp.gt.f32.partialorder %v1171, 0.0
  %vm1180 = vcmp.gt.f32.partialorder %v1172, 0.0
  %vm1181 = vcmp.gt.f32.partialorder %v1173, 0.0
  %vm1182 = vcmp.gt.f32.partialorder %v1174, 0.0
  %v1183 = vmul.f32 %v1167, 0.2
  %v1184 = vmul.f32 %v1168, 0.2
  %v1185 = vmul.f32 %v1169, 0.2
  %v1186 = vmul.f32 %v1170, 0.2
  %v1187 = vmul.f32 %v1171, 0.2
  %v1188 = vmul.f32 %v1172, 0.2
  %v1189 = vmul.f32 %v1173, 0.2
  %v1190 = vmul.f32 %v1174, 0.2
  %v1191 = vsel %vm1175, %v1167, %v1183
  %v1192 = vsel %vm1176, %v1168, %v1184
  %v1193 = vsel %vm1177, %v1169, %v1185
  %v1194 = vsel %vm1178, %v1170, %v1186
  %v1195 = vsel %vm1179, %v1171, %v1187
  %v1196 = vsel %vm1180, %v1172, %v1188
  %v1197 = vsel %vm1181, %v1173, %v1189
  %v1198 = vsel %vm1182, %v1174, %v1190
  %v1199 = vsel %vm427, %v1191, -1e+30
  %v1200 = vsel %vm428, %v1192, -1e+30
  %v1201 = vsel %vm429, %v1193, -1e+30
  %v1202 = vsel %vm430, %v1194, -1e+30
  %v1203 = vsel %vm431, %v1195, -1e+30
  %v1204 = vsel %vm432, %v1196, -1e+30
  %v1205 = vsel %vm433, %v1197, -1e+30
  %v1206 = vsel %vm434, %v1198, -1e+30
  %v1207 = vsel %vm362, %v1199, -inf
  %1208 = vmax.xlane.f32.xlu0 %v1207
  %v1209 = vpop.xlane.xlu0 %1208
  %v1210 = vsel %vm362, %v1200, -inf
  %1211 = vmax.xlane.f32.xlu0 %v1210
  %v1212 = vpop.xlane.xlu0 %1211
  %v1213 = vsel %vm362, %v1201, -inf
  %1214 = vmax.xlane.f32.xlu0 %v1213
  %v1215 = vpop.xlane.xlu0 %1214
  %v1216 = vsel %vm362, %v1202, -inf
  %1217 = vmax.xlane.f32.xlu0 %v1216
  %v1218 = vpop.xlane.xlu0 %1217
  %v1219 = vsel %vm362, %v1203, -inf
  %1220 = vmax.xlane.f32.xlu0 %v1219
  %v1221 = vpop.xlane.xlu0 %1220
  %v1222 = vsel %vm362, %v1204, -inf
  %1223 = vmax.xlane.f32.xlu0 %v1222
  %v1224 = vpop.xlane.xlu0 %1223
  %v1225 = vsel %vm362, %v1205, -inf
  %1226 = vmax.xlane.f32.xlu0 %v1225
  %v1227 = vpop.xlane.xlu0 %1226
  %v1228 = vsel %vm362, %v1206, -inf
  %1229 = vmax.xlane.f32.xlu0 %v1228
  %v1230 = vpop.xlane.xlu0 %1229
  %v1231 = vsub.f32 %v1199, %v1209
  %v1232 = vsub.f32 %v1200, %v1212
  %v1233 = vsub.f32 %v1201, %v1215
  %v1234 = vsub.f32 %v1202, %v1218
  %v1235 = vsub.f32 %v1203, %v1221
  %v1236 = vsub.f32 %v1204, %v1224
  %v1237 = vsub.f32 %v1205, %v1227
  %v1238 = vsub.f32 %v1206, %v1230
  %v1239 = vmul.f32 %v1231, 1.442695
  %v1240 = vpow.pop %v1239
  %v1241 = vmul.f32 %v1232, 1.442695
  %v1242 = vpow.pop %v1241
  %v1243 = vmul.f32 %v1233, 1.442695
  %v1244 = vpow.pop %v1243
  %v1245 = vmul.f32 %v1234, 1.442695
  %v1246 = vpow.pop %v1245
  %v1247 = vmul.f32 %v1235, 1.442695
  %v1248 = vpow.pop %v1247
  %v1249 = vmul.f32 %v1236, 1.442695
  %v1250 = vpow.pop %v1249
  %v1251 = vmul.f32 %v1237, 1.442695
  %v1252 = vpow.pop %v1251
  %v1253 = vmul.f32 %v1238, 1.442695
  %v1254 = vpow.pop %v1253
  %v1255 = vmul.f32 %v1240, %v14
  %v1256 = vmul.f32 %v1242, %v15
  %v1257 = vmul.f32 %v1244, %v16
  %v1258 = vmul.f32 %v1246, %v17
  %v1259 = vmul.f32 %v1248, %v18
  %v1260 = vmul.f32 %v1250, %v19
  %v1261 = vmul.f32 %v1252, %v20
  %v1262 = vmul.f32 %v1254, %v21
  %v1263 = vsel %vm362, %v1255, 0.0
  %1264 = vadd.xlane.f32.xlu0 %v1263
  %v1265 = vpop.xlane.xlu0 %1264
  %v1266 = vsel %vm362, %v1256, 0.0
  %1267 = vadd.xlane.f32.xlu0 %v1266
  %v1268 = vpop.xlane.xlu0 %1267
  %v1269 = vsel %vm362, %v1257, 0.0
  %1270 = vadd.xlane.f32.xlu0 %v1269
  %v1271 = vpop.xlane.xlu0 %1270
  %v1272 = vsel %vm362, %v1258, 0.0
  %1273 = vadd.xlane.f32.xlu0 %v1272
  %v1274 = vpop.xlane.xlu0 %1273
  %v1275 = vsel %vm362, %v1259, 0.0
  %1276 = vadd.xlane.f32.xlu0 %v1275
  %v1277 = vpop.xlane.xlu0 %1276
  %v1278 = vsel %vm362, %v1260, 0.0
  %1279 = vadd.xlane.f32.xlu0 %v1278
  %v1280 = vpop.xlane.xlu0 %1279
  %v1281 = vsel %vm362, %v1261, 0.0
  %1282 = vadd.xlane.f32.xlu0 %v1281
  %v1283 = vpop.xlane.xlu0 %1282
  %v1284 = vsel %vm362, %v1262, 0.0
  %1285 = vadd.xlane.f32.xlu0 %v1284
  %v1286 = vpop.xlane.xlu0 %1285
  %vm1287 = vcmp.gt.f32.partialorder %v1265, 0.0
  %vm1288 = vcmp.gt.f32.partialorder %v1268, 0.0
  %vm1289 = vcmp.gt.f32.partialorder %v1271, 0.0
  %vm1290 = vcmp.gt.f32.partialorder %v1274, 0.0
  %vm1291 = vcmp.gt.f32.partialorder %v1277, 0.0
  %vm1292 = vcmp.gt.f32.partialorder %v1280, 0.0
  %vm1293 = vcmp.gt.f32.partialorder %v1283, 0.0
  %vm1294 = vcmp.gt.f32.partialorder %v1286, 0.0
  %v1295 = vsel %vm1287, %v1265, 1.0
  %v1296 = vsel %vm1288, %v1268, 1.0
  %v1297 = vsel %vm1289, %v1271, 1.0
  %v1298 = vsel %vm1290, %v1274, 1.0
  %v1299 = vsel %vm1291, %v1277, 1.0
  %v1300 = vsel %vm1292, %v1280, 1.0
  %v1301 = vsel %vm1293, %v1283, 1.0
  %v1302 = vsel %vm1294, %v1286, 1.0
  %v1303 = vrcp.pop %v1295
  %v1304 = vrcp.pop %v1296
  %v1305 = vrcp.pop %v1297
  %v1306 = vrcp.pop %v1298
  %v1307 = vrcp.pop %v1299
  %v1308 = vrcp.pop %v1300
  %v1309 = vrcp.pop %v1301
  %v1310 = vrcp.pop %v1302
  %v1311 = vmul.f32 %v1295, %v1303
  %v1312 = vmul.f32 %v1296, %v1304
  %v1313 = vmul.f32 %v1297, %v1305
  %v1314 = vmul.f32 %v1298, %v1306
  %v1315 = vmul.f32 %v1299, %v1307
  %v1316 = vmul.f32 %v1300, %v1308
  %v1317 = vmul.f32 %v1301, %v1309
  %v1318 = vmul.f32 %v1302, %v1310
  %v1319 = vsub.f32 2.0, %v1311
  %v1320 = vsub.f32 2.0, %v1312
  %v1321 = vsub.f32 2.0, %v1313
  %v1322 = vsub.f32 2.0, %v1314
  %v1323 = vsub.f32 2.0, %v1315
  %v1324 = vsub.f32 2.0, %v1316
  %v1325 = vsub.f32 2.0, %v1317
  %v1326 = vsub.f32 2.0, %v1318
  %v1327 = vmul.f32 %v1303, %v1319
  %v1328 = vmul.f32 %v1304, %v1320
  %v1329 = vmul.f32 %v1305, %v1321
  %v1330 = vmul.f32 %v1306, %v1322
  %v1331 = vmul.f32 %v1307, %v1323
  %v1332 = vmul.f32 %v1308, %v1324
  %v1333 = vmul.f32 %v1309, %v1325
  %v1334 = vmul.f32 %v1310, %v1326
  %v1335 = vmul.f32 %v1255, %v1327
  %v1336 = vmul.f32 %v1256, %v1328
  %v1337 = vmul.f32 %v1257, %v1329
  %v1338 = vmul.f32 %v1258, %v1330
  %v1339 = vmul.f32 %v1259, %v1331
  %v1340 = vmul.f32 %v1260, %v1332
  %v1341 = vmul.f32 %v1261, %v1333
  %v1342 = vmul.f32 %v1262, %v1334
  %v1344 = vsel %vm362, %v1335, 0
  %v1347 = vsel %vm362, %v1336, 0
  %v1350 = vsel %vm362, %v1337, 0
  %v1353 = vsel %vm362, %v1338, 0
  %v1356 = vsel %vm362, %v1339, 0
  %v1359 = vsel %vm362, %v1340, 0
  %v1362 = vsel %vm362, %v1341, 0
  %v1365 = vsel %vm362, %v1342, 0
  %1367 = vmatprep.subr.mxu0 0.0
  %1368 = vmatpush1.msra.mxu0 %v920
  %1369 = vmatprep.subr.mxu0 0.0
  %1370 = vmatpush1.msra.mxu0 %v925
  %1371 = vmatprep.subr.mxu0 0.0
  %1372 = vmatpush1.msra.mxu0 0.0
  %1373 = vmatprep.subr.mxu0 0.0
  %1374 = vmatpush1.msra.mxu0 0.0
  %1375 = vmatprep.subr.mxu0 0.0
  %1376 = vmatpush1.msra.mxu0 0.0
  %1377 = vmatprep.subr.mxu0 0.0
  %1378 = vmatpush1.msra.mxu0 0.0
  %1379 = vmatprep.subr.mxu0 0.0
  %1380 = vmatpush1.msra.mxu0 0.0
  %1381 = vmatprep.subr.mxu0 0.0
  %1382 = vmatpush1.msra.mxu0 0.0
  %1383 = vmatprep.subr.mxu0 0.0
  %1384 = vmatpush1.msra.mxu0 0.0
  %1385 = vmatprep.subr.mxu0 0.0
  %1386 = vmatpush1.msra.mxu0 0.0
  %1387 = vmatprep.subr.mxu0 0.0
  %1388 = vmatpush1.msra.mxu0 0.0
  %1389 = vmatprep.subr.mxu0 0.0
  %1390 = vmatpush1.msra.mxu0 0.0
  %1391 = vmatprep.subr.mxu0 0.0
  %1392 = vmatpush1.msra.mxu0 0.0
  %1393 = vmatprep.subr.mxu0 0.0
  %1394 = vmatpush1.msra.mxu0 0.0
  %1395 = vmatprep.subr.mxu0 0.0
  %1396 = vmatpush1.msra.mxu0 0.0
  %1397 = vmatprep.subr.mxu0 0.0
  %1398 = vmatpush1.msra.mxu0 0.0
  %1399 = vmatprep.subr.mxu0 0.0
  %1400 = vmatpush1.msra.mxu0 0.0
  %1401 = vmatprep.subr.mxu0 0.0
  %1402 = vmatpush1.msra.mxu0 0.0
  %1403 = vmatprep.subr.mxu0 0.0
  %1404 = vmatpush1.msra.mxu0 0.0
  %1405 = vmatprep.subr.mxu0 0.0
  %1406 = vmatpush1.msra.mxu0 0.0
  %1407 = vmatprep.subr.mxu0 0.0
  %1408 = vmatpush1.msra.mxu0 0.0
  %1409 = vmatprep.subr.mxu0 0.0
  %1410 = vmatpush1.msra.mxu0 0.0
  %1411 = vmatprep.subr.mxu0 0.0
  %1412 = vmatpush1.msra.mxu0 0.0
  %1413 = vmatprep.subr.mxu0 0.0
  %1414 = vmatpush1.msra.mxu0 0.0
  %1415 = vmatprep.subr.mxu0 0.0
  %1416 = vmatpush1.msra.mxu0 0.0
  %1417 = vmatprep.subr.mxu0 0.0
  %1418 = vmatpush1.msra.mxu0 0.0
  %1419 = vmatprep.subr.mxu0 0.0
  %1420 = vmatpush1.msra.mxu0 0.0
  %1421 = vmatprep.subr.mxu0 0.0
  %1422 = vmatpush1.msra.mxu0 0.0
  %1423 = vmatprep.subr.mxu0 0.0
  %1424 = vmatpush1.msra.mxu0 0.0
  %1425 = vmatprep.subr.mxu0 0.0
  %1426 = vmatpush1.msra.mxu0 0.0
  %1427 = vmatprep.subr.mxu0 0.0
  %1428 = vmatpush1.msra.mxu0 0.0
  %1429 = vmatprep.subr.mxu0 0.0
  %1430 = vmatpush1.msra.mxu0 0.0
  %1431 = vmatprep.mubr.f32.mxu0 0.0
  %1432 = vmatmul.mubr.f32.gmra.mrb[0].mxu0 %v1344
  %v1433 = vpop.f32.mrb[0].mxu0
  %v1434 = vadd.f32 0.0, %v1433
  %v1435 = vpop.f32.mrb[0].mxu0
  %1436 = vmatprep.mubr.f32.mxu0 0.0
  %1437 = vmatmul.mubr.f32.gmra.mrb[0].mxu0 %v1347
  %v1438 = vpop.f32.mrb[0].mxu0
  %v1439 = vadd.f32 0.0, %v1438
  %v1440 = vpop.f32.mrb[0].mxu0
  %1441 = vmatprep.mubr.f32.mxu0 0.0
  %1442 = vmatmul.mubr.f32.gmra.mrb[0].mxu0 %v1350
  %v1443 = vpop.f32.mrb[0].mxu0
  %v1444 = vadd.f32 0.0, %v1443
  %v1445 = vpop.f32.mrb[0].mxu0
  %1446 = vmatprep.mubr.f32.mxu0 0.0
  %1447 = vmatmul.mubr.f32.gmra.mrb[0].mxu0 %v1353
  %v1448 = vpop.f32.mrb[0].mxu0
  %v1449 = vadd.f32 0.0, %v1448
  %v1450 = vpop.f32.mrb[0].mxu0
  %1451 = vmatprep.mubr.f32.mxu0 0.0
  %1452 = vmatmul.mubr.f32.gmra.mrb[0].mxu0 %v1356
  %v1453 = vpop.f32.mrb[0].mxu0
  %v1454 = vadd.f32 0.0, %v1453
  %v1455 = vpop.f32.mrb[0].mxu0
  %1456 = vmatprep.mubr.f32.mxu0 0.0
  %1457 = vmatmul.mubr.f32.gmra.mrb[0].mxu0 %v1359
  %v1458 = vpop.f32.mrb[0].mxu0
  %v1459 = vadd.f32 0.0, %v1458
  %v1460 = vpop.f32.mrb[0].mxu0
  %1461 = vmatprep.mubr.f32.mxu0 0.0
  %1462 = vmatmul.mubr.f32.gmra.mrb[0].mxu0 %v1362
  %v1463 = vpop.f32.mrb[0].mxu0
  %v1464 = vadd.f32 0.0, %v1463
  %v1465 = vpop.f32.mrb[0].mxu0
  %1466 = vmatprep.mubr.f32.mxu0 0.0
  %1467 = vmatmul.mubr.f32.gmra.mrb[0].mxu0 %v1365
  %v1468 = vpop.f32.mrb[0].mxu0
  %v1469 = vadd.f32 0.0, %v1468
  %v1470 = vpop.f32.mrb[0].mxu0
  %1471 = vdwg.mxu0
  %v1472 = vmul.f32 %v1434, %v32
  %v1473 = vmul.f32 %v1439, %v33
  %v1474 = vmul.f32 %v1444, %v34
  %v1475 = vmul.f32 %v1449, %v35
  %v1476 = vmul.f32 %v1454, %v36
  %v1477 = vmul.f32 %v1459, %v37
  %v1478 = vmul.f32 %v1464, %v38
  %v1479 = vmul.f32 %v1469, %v39
  %v1480 = vlaneseq
  %v1481 = vshrl.u32 %v1480, 7
  %v1482 = vsub.s32 1, %v1481
  %v1483 = vrot.slane %v842, %v1482
  %1484 = vmatprep.subr.mxu0 0.0
  %1485 = vmatpush1.msra.mxu0 %v1472
  %1486 = vmatprep.subr.mxu0 0.0
  %1487 = vmatpush1.msra.mxu0 %v1473
  %1488 = vmatprep.subr.mxu0 0.0
  %1489 = vmatpush1.msra.mxu0 %v1474
  %1490 = vmatprep.subr.mxu0 0.0
  %1491 = vmatpush1.msra.mxu0 %v1475
  %1492 = vmatprep.subr.mxu0 0.0
  %1493 = vmatpush1.msra.mxu0 %v1476
  %1494 = vmatprep.subr.mxu0 0.0
  %1495 = vmatpush1.msra.mxu0 %v1477
  %1496 = vmatprep.subr.mxu0 0.0
  %1497 = vmatpush1.msra.mxu0 %v1478
  %1498 = vmatprep.subr.mxu0 0.0
  %1499 = vmatpush1.msra.mxu0 %v1479
  %1500 = vmatprep.subr.mxu0 0.0
  %1501 = vmatpush1.msra.mxu0 0.0
  %1502 = vmatprep.subr.mxu0 0.0
  %1503 = vmatpush1.msra.mxu0 0.0
  %1504 = vmatprep.subr.mxu0 0.0
  %1505 = vmatpush1.msra.mxu0 0.0
  %1506 = vmatprep.subr.mxu0 0.0
  %1507 = vmatpush1.msra.mxu0 0.0
  %1508 = vmatprep.subr.mxu0 0.0
  %1509 = vmatpush1.msra.mxu0 0.0
  %1510 = vmatprep.subr.mxu0 0.0
  %1511 = vmatpush1.msra.mxu0 0.0
  %1512 = vmatprep.subr.mxu0 0.0
  %1513 = vmatpush1.msra.mxu0 0.0
  %1514 = vmatprep.subr.mxu0 0.0
  %1515 = vmatpush1.msra.mxu0 0.0
  %1516 = vmatprep.subr.mxu0 0.0
  %1517 = vmatpush1.msra.mxu0 0.0
  %1518 = vmatprep.subr.mxu0 0.0
  %1519 = vmatpush1.msra.mxu0 0.0
  %1520 = vmatprep.subr.mxu0 0.0
  %1521 = vmatpush1.msra.mxu0 0.0
  %1522 = vmatprep.subr.mxu0 0.0
  %1523 = vmatpush1.msra.mxu0 0.0
  %1524 = vmatprep.subr.mxu0 0.0
  %1525 = vmatpush1.msra.mxu0 0.0
  %1526 = vmatprep.subr.mxu0 0.0
  %1527 = vmatpush1.msra.mxu0 0.0
  %1528 = vmatprep.subr.mxu0 0.0
  %1529 = vmatpush1.msra.mxu0 0.0
  %1530 = vmatprep.subr.mxu0 0.0
  %1531 = vmatpush1.msra.mxu0 0.0
  %1532 = vmatprep.subr.mxu0 0.0
  %1533 = vmatpush1.msra.mxu0 0.0
  %1534 = vmatprep.subr.mxu0 0.0
  %1535 = vmatpush1.msra.mxu0 0.0
  %1536 = vmatprep.subr.mxu0 0.0
  %1537 = vmatpush1.msra.mxu0 0.0
  %1538 = vmatprep.subr.mxu0 0.0
  %1539 = vmatpush1.msra.mxu0 0.0
  %1540 = vmatprep.subr.mxu0 0.0
  %1541 = vmatpush1.msra.mxu0 0.0
  %1542 = vmatprep.subr.mxu0 0.0
  %1543 = vmatpush1.msra.mxu0 0.0
  %1544 = vmatprep.subr.mxu0 0.0
  %1545 = vmatpush1.msra.mxu0 0.0
  %1546 = vmatprep.subr.mxu0 0.0
  %1547 = vmatpush1.msra.mxu0 0.0
  %1548 = vmatprep.mubr.f32.mxu0 0.0
  %1549 = vmatmul.mubr.f32.gmra.mrb[0].mxu0 %v722
  %v1550 = vpop.f32.mrb[0].mxu0
  %v1551 = vpop.f32.mrb[0].mxu0
  %1552 = vmatprep.mubr.f32.mxu0 0.0
  %1553 = vmatmul.mubr.f32.gmra.mrb[0].mxu0 %v725
  %v1554 = vpop.f32.mrb[0].mxu0
  %v1555 = vadd.f32 %v1483, %v1554
  %v1556 = vpop.f32.mrb[0].mxu0
  %1557 = vdwg.mxu0
  %vm1558 = vcmp.gt.f32.partialorder %v1555, 0.0
  %v1559 = vmin.f32 %v1555, 0.0
  %v1560 = vmul.f32 %v1559, 1.442695
  %v1561 = vpow.pop %v1560
  %v1562 = vsub.f32 %v1561, 1.0
  %v1563 = vsel %vm1558, %v1555, %v1562
  %v1564 = vld [vmem:[%s2 + $0x1d0] sm:$0xff]
  %v1565 = vld [vmem:[%s2 + $0x1d8] sm:$0xff]
  %v1566 = vld [vmem:[%s2 + $0x1e0] sm:$0xff]
  %v1567 = vld [vmem:[%s2 + $0x1e8] sm:$0xff]
  %v1568 = vld [vmem:[%s2 + $0x1f0] sm:$0xff]
  %v1569 = vlaneseq
  %v1570 = vshrl.u32 %v1569, 7
  %v1571 = vsub.s32 0, %v1570
  %v1572 = vrot.slane %v1568, %v1571
  %v1574 = vrot.slane %v1563, 4
  %v1575 = vsel %vm154, %v1574, 0
  %1577 = vmatprep.subr.mxu0 0.0
  %1578 = vmatpush1.msra.mxu0 %v1564
  %1579 = vmatprep.subr.mxu0 0.0
  %1580 = vmatpush1.msra.mxu0 %v1565
  %1581 = vmatprep.subr.mxu0 0.0
  %1582 = vmatpush1.msra.mxu0 %v1566
  %1583 = vmatprep.subr.mxu0 0.0
  %1584 = vmatpush1.msra.mxu0 %v1567
  %1585 = vmatprep.subr.mxu0 0.0
  %1586 = vmatpush1.msra.mxu0 0.0
  %1587 = vmatprep.subr.mxu0 0.0
  %1588 = vmatpush1.msra.mxu0 0.0
  %1589 = vmatprep.subr.mxu0 0.0
  %1590 = vmatpush1.msra.mxu0 0.0
  %1591 = vmatprep.subr.mxu0 0.0
  %1592 = vmatpush1.msra.mxu0 0.0
  %1593 = vmatprep.subr.mxu0 0.0
  %1594 = vmatpush1.msra.mxu0 0.0
  %1595 = vmatprep.subr.mxu0 0.0
  %1596 = vmatpush1.msra.mxu0 0.0
  %1597 = vmatprep.subr.mxu0 0.0
  %1598 = vmatpush1.msra.mxu0 0.0
  %1599 = vmatprep.subr.mxu0 0.0
  %1600 = vmatpush1.msra.mxu0 0.0
  %1601 = vmatprep.subr.mxu0 0.0
  %1602 = vmatpush1.msra.mxu0 0.0
  %1603 = vmatprep.subr.mxu0 0.0
  %1604 = vmatpush1.msra.mxu0 0.0
  %1605 = vmatprep.subr.mxu0 0.0
  %1606 = vmatpush1.msra.mxu0 0.0
  %1607 = vmatprep.subr.mxu0 0.0
  %1608 = vmatpush1.msra.mxu0 0.0
  %1609 = vmatprep.subr.mxu0 0.0
  %1610 = vmatpush1.msra.mxu0 0.0
  %1611 = vmatprep.subr.mxu0 0.0
  %1612 = vmatpush1.msra.mxu0 0.0
  %1613 = vmatprep.subr.mxu0 0.0
  %1614 = vmatpush1.msra.mxu0 0.0
  %1615 = vmatprep.subr.mxu0 0.0
  %1616 = vmatpush1.msra.mxu0 0.0
  %1617 = vmatprep.subr.mxu0 0.0
  %1618 = vmatpush1.msra.mxu0 0.0
  %1619 = vmatprep.subr.mxu0 0.0
  %1620 = vmatpush1.msra.mxu0 0.0
  %1621 = vmatprep.subr.mxu0 0.0
  %1622 = vmatpush1.msra.mxu0 0.0
  %1623 = vmatprep.subr.mxu0 0.0
  %1624 = vmatpush1.msra.mxu0 0.0
  %1625 = vmatprep.subr.mxu0 0.0
  %1626 = vmatpush1.msra.mxu0 0.0
  %1627 = vmatprep.subr.mxu0 0.0
  %1628 = vmatpush1.msra.mxu0 0.0
  %1629 = vmatprep.subr.mxu0 0.0
  %1630 = vmatpush1.msra.mxu0 0.0
  %1631 = vmatprep.subr.mxu0 0.0
  %1632 = vmatpush1.msra.mxu0 0.0
  %1633 = vmatprep.subr.mxu0 0.0
  %1634 = vmatpush1.msra.mxu0 0.0
  %1635 = vmatprep.subr.mxu0 0.0
  %1636 = vmatpush1.msra.mxu0 0.0
  %1637 = vmatprep.subr.mxu0 0.0
  %1638 = vmatpush1.msra.mxu0 0.0
  %1639 = vmatprep.subr.mxu0 0.0
  %1640 = vmatpush1.msra.mxu0 0.0
  %1641 = vmatprep.mubr.f32.mxu0 0.0
  %1642 = vmatmul.mubr.f32.gmra.mrb[0].mxu0 %v1575
  %v1643 = vpop.f32.mrb[0].mxu0
  %v1644 = vadd.f32 %v1572, %v1643
  %v1645 = vpop.f32.mrb[0].mxu0
  %1646 = vdwg.mxu0
  %v1647 = vsub.f32 0.0, %v1644
  %v1648 = vmul.f32 %v1647, 1.442695
  %v1649 = vpow.pop %v1648
  %v1650 = vadd.f32 %v1649, 1.0
  %v1651 = vrcp.pop %v1650
  %v1652 = vmul.f32 1.0, %v1651
  %vm1653 = vcmask 3072
  %1654 = vst.msk [vmem:[%s3] sm:$0xf] %vm1653, %v1652
  // Predicated region
  $region14: #{tpu_custom_call.1} parent=0 // pred_check
    _
  $region15: #{tpu_custom_call.1} parent=0 // pred_check_branch
    %1656 = sbr.rel (0) target = $region17
  $region16: #{tpu_custom_call.1} parent=0 // pred_region
    _
  $region17: #{tpu_custom_call.1} parent=0 // pred_fallthru
    _
  // Predicated region
  $region18: #{tpu_custom_call.1} parent=0 // pred_check
    _
  $region19: #{tpu_custom_call.1} parent=0 // pred_check_branch
    %1658 = sbr.rel (0) target = $region21
  $region20: #{tpu_custom_call.1} parent=0 // pred_region
    _
  $region21: #{tpu_custom_call.1} parent=0 // pred_fallthru
    _

</llo_original>
